<compile_context>
chip_gen: v7x
topology: tpu7x:2x2x1
jax: 0.10.0
libtpu: 0.0.40
codegen_flags: <defaults>
</compile_context>

<pallas_src>
import jax
import jax.numpy as jnp
from jax.experimental import pallas as pl
from jax.experimental.pallas import tpu as pltpu

_BN_EPS = 1e-5


# -----------------------------------------------------------------------------
# Fused forward kernel: 3 x (EdgeConv + BN [+ ReLU]) + mean-pool + Linear + softmax
# -----------------------------------------------------------------------------
def _fused_forward_kernel(
    x_ref,        # (N, F)    node features
    gat_ref,      # (E, 2N)   [dst_oh | src_oh] one-hot gather matrix
    pool_ref,     # (G, N)    normalized mean-pool matrix (rows sum to 1)
    w1_ref,       # (2F, H)   [wi1; wj1]
    w23_ref,      # (4H, H)   [wi2; wj2; wi3; wj3]
    vec_ref,      # (9, H)    rows: b1,g1,be1, b2,g2,be2, b3,g3,be3
    wl_ref,       # (H, C)
    bl_ref,       # (1, C)
    o_ref,        # (G, C)    softmax probabilities
):
    f32 = jnp.float32

    gat = gat_ref[...]                       # (E, 2N)
    num_nodes = gat.shape[1] // 2
    dst_oh = gat[:, :num_nodes]              # (E, N): dst_oh[e,n]=1 iff edge e targets node n
    vecs = vec_ref[...]                      # (9, H)

    def edge_conv_bn(h, wi, wj, layer, apply_relu):
        b = vecs[3 * layer + 0:3 * layer + 1, :]       # (1, H)
        gamma = vecs[3 * layer + 1:3 * layer + 2, :]   # (1, H)
        beta = vecs[3 * layer + 2:3 * layer + 3, :]    # (1, H)

        # Message MLP: relu([x_i, x_j - x_i] @ W + b) == relu(x_i@wi + x_j@wj + b)
        #   = relu([dst_oh | src_oh] @ [[h@wi],[h@wj]] + b)
        # -> 2 tiny weight GEMMs + ONE gather GEMM instead of 2 gathers + 2 GEMMs.
        hw = jnp.concatenate(
            [jnp.dot(h, wi, preferred_element_type=f32),
             jnp.dot(h, wj, preferred_element_type=f32)],
            axis=0)                                                    # (2N, H)
        msg = jnp.maximum(jnp.dot(gat, hw, preferred_element_type=f32) + b, 0.0)  # (E, H)

        # Scatter-max to target nodes (exact PyG semantics): msg >= 0 post-ReLU,
        # so a multiply-mask + max over edges suffices; isolated nodes -> 0.
        # NOTE: this relies on the ReLU in the message MLP; restore a -inf
        # identity if that ReLU is ever removed.
        agg = jnp.max(dst_oh[:, :, None] * msg[:, None, :], axis=0)   # (N, H)

        # BatchNorm1d (training mode: batch stats, biased variance), one pass.
        mean = jnp.mean(agg, axis=0, keepdims=True)
        msq = jnp.mean(agg * agg, axis=0, keepdims=True)
        var = jnp.maximum(msq - mean * mean, 0.0)
        y = (agg - mean) * jax.lax.rsqrt(var + _BN_EPS) * gamma + beta
        if apply_relu:
            y = jnp.maximum(y, 0.0)
        return y

    h = x_ref[...]                                                     # (N, F)
    num_feat = h.shape[1]
    w1 = w1_ref[...]                                                   # (2F, H)
    w23 = w23_ref[...]                                                 # (4H, H)
    hidden = w23.shape[1]

    h = edge_conv_bn(h, w1[:num_feat], w1[num_feat:], 0, True)
    h = edge_conv_bn(h, w23[0 * hidden:1 * hidden], w23[1 * hidden:2 * hidden], 1, True)
    h = edge_conv_bn(h, w23[2 * hidden:3 * hidden], w23[3 * hidden:4 * hidden], 2, False)

    # global_mean_pool (normalized pooling matmul) + Linear + softmax
    pooled = jnp.dot(pool_ref[...], h, preferred_element_type=f32)     # (G, H)
    logits = jnp.dot(pooled, wl_ref[...], preferred_element_type=f32) + bl_ref[...]
    m = jnp.max(logits, axis=1, keepdims=True)
    e = jnp.exp(logits - m)
    denom = jnp.sum(e, axis=1, keepdims=True)
    o_ref[...] = (e / denom).astype(o_ref.dtype)     # exact reciprocal: output is a prob. dist.


# -----------------------------------------------------------------------------
# Topology-static matrices (built ONCE per graph topology, outside the forward).
# -----------------------------------------------------------------------------
def build_topology(edge_index, batch, num_nodes, num_graphs):
    src, dst = edge_index[0], edge_index[1]
    node_ids = jnp.arange(num_nodes)
    # PyG EdgeConv: x_i = x[edge_index[1]] (target), x_j = x[edge_index[0]] (source),
    # aggregation indexed by the target. gather_cat = [dst_oh | src_oh].
    dst_oh = (dst[:, None] == node_ids[None, :]).astype(jnp.float32)     # (E, N)
    src_oh = (src[:, None] == node_ids[None, :]).astype(jnp.float32)     # (E, N)
    gather_cat = jnp.concatenate([dst_oh, src_oh], axis=1)               # (E, 2N)
    graph_oh = (batch[None, :] == jnp.arange(num_graphs)[:, None]).astype(jnp.float32)  # (G, N)
    counts = jnp.maximum(graph_oh.sum(axis=1, keepdims=True), 1.0)
    pool_mat = graph_oh / counts                                         # rows sum to 1
    return gather_cat, pool_mat


# -----------------------------------------------------------------------------
# Forward pass: single fused pallas_call; everything lives in VMEM.
# -----------------------------------------------------------------------------
def graph_network_forward(params, data_x, topo):
    x = data_x[0]                                   # (num_nodes, num_features)
    gather_cat, pool_mat = topo
    num_graphs = pool_mat.shape[0]
    num_classes = params["w_lin"].shape[1]

    vmem = pl.BlockSpec(memory_space=pltpu.MemorySpace.VMEM)  # whole array, VMEM-resident
    inputs = (
        x, gather_cat, pool_mat,
        params["w1"], params["w23"], params["vecs"],
        params["w_lin"], params["b_lin"],
    )
    return pl.pallas_call(
        _fused_forward_kernel,
        out_shape=jax.ShapeDtypeStruct((num_graphs, num_classes), jnp.float32),
        in_specs=[vmem] * len(inputs),
        out_specs=vmem,
    )(*inputs)


# -----------------------------------------------------------------------------
# Deterministic parameter init (PyTorch Linear default U(-1/sqrt(fan_in), +)),
# with the one-time W -> (W1 - W2, W2) EdgeConv weight transform and packing.
# -----------------------------------------------------------------------------
def init_params(key, num_features, hidden, num_classes):
    def linear_init(k, fan_in, fan_out):
        k1, k2 = jax.random.split(k)
        bound = 1.0 / jnp.sqrt(fan_in)
        w = jax.random.uniform(k1, (fan_in, fan_out), jnp.float32, -bound, bound)
        b = jax.random.uniform(k2, (fan_out,), jnp.float32, -bound, bound)
        return w, b

    def split_edge_weight(w, fan_half):
        # concat(x_i, x_j - x_i) @ W == x_i @ (W1 - W2) + x_j @ W2
        w1, w2 = w[:fan_half], w[fan_half:]
        return w1 - w2, w2

    keys = jax.random.split(key, 4)
    w1, b1 = linear_init(keys[0], 2 * num_features, hidden)
    w2, b2 = linear_init(keys[1], 2 * hidden, hidden)
    w3, b3 = linear_init(keys[2], 2 * hidden, hidden)
    wl, bl = linear_init(keys[3], hidden, num_classes)

    wi1, wj1 = split_edge_weight(w1, num_features)
    wi2, wj2 = split_edge_weight(w2, hidden)
    wi3, wj3 = split_edge_weight(w3, hidden)

    ones = jnp.ones((1, hidden), jnp.float32)    # BN gamma
    zeros = jnp.zeros((1, hidden), jnp.float32)  # BN beta
    # Pack all (1,H) vectors into one (9,H) array: b,gamma,beta per layer.
    vecs = jnp.concatenate(
        [b1.reshape(1, hidden), ones, zeros,
         b2.reshape(1, hidden), ones, zeros,
         b3.reshape(1, hidden), ones, zeros], axis=0)

    return dict(
        w1=jnp.concatenate([wi1, wj1], axis=0),                 # (2F, H)
        w23=jnp.concatenate([wi2, wj2, wi3, wj3], axis=0),      # (4H, H)
        vecs=vecs,                                               # (9, H)
        w_lin=wl,                                                # (H, C)
        b_lin=bl.reshape(1, num_classes),                        # (1, C)
    )


if __name__ == "__main__":
    num_nodes = 16                 # dataset.num_nodes (== num_features per the module)
    num_features = num_nodes
    hidden = 32
    num_classes = 2
    num_graphs = 2                 # two graphs of 8 nodes each

    key = jax.random.PRNGKey(0)
    k_params, k_x = jax.random.split(key)
    params = init_params(k_params, num_features, hidden, num_classes)

    # data.x has a leading dim; forward uses data.x[0] -> (num_nodes, num_features)
    data_x = jax.random.normal(k_x, (1, num_nodes, num_features), jnp.float32)

    # Bidirectional ring edges inside each graph (8 nodes per graph).
    src_list, dst_list, batch_list = [], [], []
    for g in range(num_graphs):
        base = g * 8
        for k in range(8):
            a, b_ = base + k, base + (k + 1) % 8
            src_list += [a, b_]
            dst_list += [b_, a]
        batch_list += [g] * 8
    edge_index = jnp.array([src_list, dst_list], dtype=jnp.int32)   # (2, 32)
    batch = jnp.array(batch_list, dtype=jnp.int32)                  # (16,)

    # Topology-static gather/pool matrices, built once (not per forward).
    topo = build_topology(edge_index, batch, num_nodes, num_graphs)

    fwd = jax.jit(graph_network_forward)
    out = jax.block_until_ready(fwd(params, data_x, topo))

    assert out.shape == (num_graphs, num_classes)
    assert bool(jnp.all(jnp.isfinite(out)))
    # softmax rows sum to 1 (exact reciprocal path)
    assert bool(jnp.allclose(out.sum(axis=1), 1.0, atol=1e-5))
    print("KERNEL_OK")
</pallas_src>

<mosaic_0001>
module attributes {stable_mosaic.version = 11 : i64} {
  func.func @_fused_forward_kernel(%arg0: memref<16x16xf32, #tpu.memory_space<vmem>>, %arg1: memref<32x32xf32, #tpu.memory_space<vmem>>, %arg2: memref<2x16xf32, #tpu.memory_space<vmem>>, %arg3: memref<32x32xf32, #tpu.memory_space<vmem>>, %arg4: memref<128x32xf32, #tpu.memory_space<vmem>>, %arg5: memref<9x32xf32, #tpu.memory_space<vmem>>, %arg6: memref<32x2xf32, #tpu.memory_space<vmem>>, %arg7: memref<1x2xf32, #tpu.memory_space<vmem>>, %arg8: memref<2x2xf32, #tpu.memory_space<vmem>>) attributes {dimension_semantics = [], scalar_prefetch = 0 : i64, scratch_operands = 0 : i64, tpu.core_type = #tpu.core_type<tc>} {
    %c0 = arith.constant 0 : index
    %c0_0 = arith.constant 0 : index
    %0 = vector.load %arg1[%c0, %c0_0] : memref<32x32xf32, #tpu.memory_space<vmem>>, vector<32x32xf32>
    %1 = vector.extract_strided_slice %0 {offsets = [0, 0], sizes = [32, 16], strides = [1, 1]} : vector<32x32xf32> to vector<32x16xf32>
    %c0_1 = arith.constant 0 : index
    %c0_2 = arith.constant 0 : index
    %2 = vector.load %arg5[%c0_1, %c0_2] : memref<9x32xf32, #tpu.memory_space<vmem>>, vector<9x32xf32>
    %c0_3 = arith.constant 0 : index
    %c0_4 = arith.constant 0 : index
    %3 = vector.load %arg0[%c0_3, %c0_4] : memref<16x16xf32, #tpu.memory_space<vmem>>, vector<16x16xf32>
    %c0_5 = arith.constant 0 : index
    %c0_6 = arith.constant 0 : index
    %4 = vector.load %arg3[%c0_5, %c0_6] : memref<32x32xf32, #tpu.memory_space<vmem>>, vector<32x32xf32>
    %c0_7 = arith.constant 0 : index
    %c0_8 = arith.constant 0 : index
    %5 = vector.load %arg4[%c0_7, %c0_8] : memref<128x32xf32, #tpu.memory_space<vmem>>, vector<128x32xf32>
    %6 = vector.extract_strided_slice %4 {offsets = [0, 0], sizes = [16, 32], strides = [1, 1]} : vector<32x32xf32> to vector<16x32xf32>
    %7 = vector.extract_strided_slice %4 {offsets = [16, 0], sizes = [16, 32], strides = [1, 1]} : vector<32x32xf32> to vector<16x32xf32>
    %8 = vector.extract_strided_slice %2 {offsets = [0, 0], sizes = [1, 32], strides = [1, 1]} : vector<9x32xf32> to vector<1x32xf32>
    %9 = vector.extract_strided_slice %2 {offsets = [1, 0], sizes = [1, 32], strides = [1, 1]} : vector<9x32xf32> to vector<1x32xf32>
    %10 = vector.extract_strided_slice %2 {offsets = [2, 0], sizes = [1, 32], strides = [1, 1]} : vector<9x32xf32> to vector<1x32xf32>
    %cst = arith.constant dense<0.000000e+00> : vector<16x32xf32>
    %11 = tpu.matmul %3, %6, %cst {dimension_numbers = #tpu.dot_dimension_numbers<[1], [0], [0], [1], [0, 0, 1, 1], [], []>} : vector<16x16xf32>, vector<16x32xf32>, vector<16x32xf32> -> vector<16x32xf32>
    %cst_9 = arith.constant dense<0.000000e+00> : vector<16x32xf32>
    %12 = tpu.matmul %3, %7, %cst_9 {dimension_numbers = #tpu.dot_dimension_numbers<[1], [0], [0], [1], [0, 0, 1, 1], [], []>} : vector<16x16xf32>, vector<16x32xf32>, vector<16x32xf32> -> vector<16x32xf32>
    %13 = tpu.concatenate %11, %12 in 0 : vector<16x32xf32>, vector<16x32xf32> -> vector<32x32xf32>
    %cst_10 = arith.constant dense<0.000000e+00> : vector<32x32xf32>
    %14 = tpu.matmul %0, %13, %cst_10 {dimension_numbers = #tpu.dot_dimension_numbers<[1], [0], [0], [1], [0, 0, 1, 1], [], []>} : vector<32x32xf32>, vector<32x32xf32>, vector<32x32xf32> -> vector<32x32xf32>
    %15 = vector.broadcast %8 : vector<1x32xf32> to vector<32x32xf32>
    %16 = arith.addf %14, %15 : vector<32x32xf32>
    %cst_11 = arith.constant 0.000000e+00 : f32
    %17 = vector.broadcast %cst_11 : f32 to vector<32x32xf32>
    %18 = arith.maximumf %16, %17 : vector<32x32xf32>
    %19 = vector.shape_cast %1 : vector<32x16xf32> to vector<32x16x1xf32>
    %20 = vector.shape_cast %18 : vector<32x32xf32> to vector<32x1x32xf32>
    %21 = vector.broadcast %19 : vector<32x16x1xf32> to vector<32x16x32xf32>
    %22 = vector.broadcast %20 : vector<32x1x32xf32> to vector<32x16x32xf32>
    %23 = arith.mulf %21, %22 : vector<32x16x32xf32>
    %cst_12 = arith.constant dense<0xFF800000> : vector<16x32xf32>
    %24 = vector.multi_reduction <maximumf>, %23, %cst_12 [0] : vector<32x16x32xf32> to vector<16x32xf32>
    %cst_13 = arith.constant dense<0.000000e+00> : vector<32xf32>
    %25 = vector.multi_reduction <add>, %24, %cst_13 [0] : vector<16x32xf32> to vector<32xf32>
    %26 = vector.shape_cast %25 : vector<32xf32> to vector<1x32xf32>
    %cst_14 = arith.constant 1.600000e+01 : f32
    %27 = vector.broadcast %cst_14 : f32 to vector<1x32xf32>
    %28 = arith.divf %26, %27 : vector<1x32xf32>
    %29 = arith.mulf %24, %24 : vector<16x32xf32>
    %cst_15 = arith.constant dense<0.000000e+00> : vector<32xf32>
    %30 = vector.multi_reduction <add>, %29, %cst_15 [0] : vector<16x32xf32> to vector<32xf32>
    %31 = vector.shape_cast %30 : vector<32xf32> to vector<1x32xf32>
    %cst_16 = arith.constant 1.600000e+01 : f32
    %32 = vector.broadcast %cst_16 : f32 to vector<1x32xf32>
    %33 = arith.divf %31, %32 : vector<1x32xf32>
    %34 = arith.mulf %28, %28 : vector<1x32xf32>
    %35 = arith.subf %33, %34 : vector<1x32xf32>
    %cst_17 = arith.constant 0.000000e+00 : f32
    %36 = vector.broadcast %cst_17 : f32 to vector<1x32xf32>
    %37 = arith.maximumf %35, %36 : vector<1x32xf32>
    %38 = vector.broadcast %28 : vector<1x32xf32> to vector<16x32xf32>
    %39 = arith.subf %24, %38 : vector<16x32xf32>
    %cst_18 = arith.constant 9.99999974E-6 : f32
    %40 = vector.broadcast %cst_18 : f32 to vector<1x32xf32>
    %41 = arith.addf %37, %40 : vector<1x32xf32>
    %42 = math.rsqrt %41 : vector<1x32xf32>
    %43 = vector.broadcast %42 : vector<1x32xf32> to vector<16x32xf32>
    %44 = arith.mulf %39, %43 : vector<16x32xf32>
    %45 = vector.broadcast %9 : vector<1x32xf32> to vector<16x32xf32>
    %46 = arith.mulf %44, %45 : vector<16x32xf32>
    %47 = vector.broadcast %10 : vector<1x32xf32> to vector<16x32xf32>
    %48 = arith.addf %46, %47 : vector<16x32xf32>
    %cst_19 = arith.constant 0.000000e+00 : f32
    %49 = vector.broadcast %cst_19 : f32 to vector<16x32xf32>
    %50 = arith.maximumf %48, %49 : vector<16x32xf32>
    %51 = vector.extract_strided_slice %5 {offsets = [0, 0], sizes = [32, 32], strides = [1, 1]} : vector<128x32xf32> to vector<32x32xf32>
    %52 = vector.extract_strided_slice %5 {offsets = [32, 0], sizes = [32, 32], strides = [1, 1]} : vector<128x32xf32> to vector<32x32xf32>
    %53 = vector.extract_strided_slice %2 {offsets = [3, 0], sizes = [1, 32], strides = [1, 1]} : vector<9x32xf32> to vector<1x32xf32>
    %54 = vector.extract_strided_slice %2 {offsets = [4, 0], sizes = [1, 32], strides = [1, 1]} : vector<9x32xf32> to vector<1x32xf32>
    %55 = vector.extract_strided_slice %2 {offsets = [5, 0], sizes = [1, 32], strides = [1, 1]} : vector<9x32xf32> to vector<1x32xf32>
    %cst_20 = arith.constant dense<0.000000e+00> : vector<16x32xf32>
    %56 = tpu.matmul %50, %51, %cst_20 {dimension_numbers = #tpu.dot_dimension_numbers<[1], [0], [0], [1], [0, 0, 1, 1], [], []>} : vector<16x32xf32>, vector<32x32xf32>, vector<16x32xf32> -> vector<16x32xf32>
    %cst_21 = arith.constant dense<0.000000e+00> : vector<16x32xf32>
    %57 = tpu.matmul %50, %52, %cst_21 {dimension_numbers = #tpu.dot_dimension_numbers<[1], [0], [0], [1], [0, 0, 1, 1], [], []>} : vector<16x32xf32>, vector<32x32xf32>, vector<16x32xf32> -> vector<16x32xf32>
    %58 = tpu.concatenate %56, %57 in 0 : vector<16x32xf32>, vector<16x32xf32> -> vector<32x32xf32>
    %cst_22 = arith.constant dense<0.000000e+00> : vector<32x32xf32>
    %59 = tpu.matmul %0, %58, %cst_22 {dimension_numbers = #tpu.dot_dimension_numbers<[1], [0], [0], [1], [0, 0, 1, 1], [], []>} : vector<32x32xf32>, vector<32x32xf32>, vector<32x32xf32> -> vector<32x32xf32>
    %60 = vector.broadcast %53 : vector<1x32xf32> to vector<32x32xf32>
    %61 = arith.addf %59, %60 : vector<32x32xf32>
    %cst_23 = arith.constant 0.000000e+00 : f32
    %62 = vector.broadcast %cst_23 : f32 to vector<32x32xf32>
    %63 = arith.maximumf %61, %62 : vector<32x32xf32>
    %64 = vector.shape_cast %1 : vector<32x16xf32> to vector<32x16x1xf32>
    %65 = vector.shape_cast %63 : vector<32x32xf32> to vector<32x1x32xf32>
    %66 = vector.broadcast %64 : vector<32x16x1xf32> to vector<32x16x32xf32>
    %67 = vector.broadcast %65 : vector<32x1x32xf32> to vector<32x16x32xf32>
    %68 = arith.mulf %66, %67 : vector<32x16x32xf32>
    %cst_24 = arith.constant dense<0xFF800000> : vector<16x32xf32>
    %69 = vector.multi_reduction <maximumf>, %68, %cst_24 [0] : vector<32x16x32xf32> to vector<16x32xf32>
    %cst_25 = arith.constant dense<0.000000e+00> : vector<32xf32>
    %70 = vector.multi_reduction <add>, %69, %cst_25 [0] : vector<16x32xf32> to vector<32xf32>
    %71 = vector.shape_cast %70 : vector<32xf32> to vector<1x32xf32>
    %cst_26 = arith.constant 1.600000e+01 : f32
    %72 = vector.broadcast %cst_26 : f32 to vector<1x32xf32>
    %73 = arith.divf %71, %72 : vector<1x32xf32>
    %74 = arith.mulf %69, %69 : vector<16x32xf32>
    %cst_27 = arith.constant dense<0.000000e+00> : vector<32xf32>
    %75 = vector.multi_reduction <add>, %74, %cst_27 [0] : vector<16x32xf32> to vector<32xf32>
    %76 = vector.shape_cast %75 : vector<32xf32> to vector<1x32xf32>
    %cst_28 = arith.constant 1.600000e+01 : f32
    %77 = vector.broadcast %cst_28 : f32 to vector<1x32xf32>
    %78 = arith.divf %76, %77 : vector<1x32xf32>
    %79 = arith.mulf %73, %73 : vector<1x32xf32>
    %80 = arith.subf %78, %79 : vector<1x32xf32>
    %cst_29 = arith.constant 0.000000e+00 : f32
    %81 = vector.broadcast %cst_29 : f32 to vector<1x32xf32>
    %82 = arith.maximumf %80, %81 : vector<1x32xf32>
    %83 = vector.broadcast %73 : vector<1x32xf32> to vector<16x32xf32>
    %84 = arith.subf %69, %83 : vector<16x32xf32>
    %cst_30 = arith.constant 9.99999974E-6 : f32
    %85 = vector.broadcast %cst_30 : f32 to vector<1x32xf32>
    %86 = arith.addf %82, %85 : vector<1x32xf32>
    %87 = math.rsqrt %86 : vector<1x32xf32>
    %88 = vector.broadcast %87 : vector<1x32xf32> to vector<16x32xf32>
    %89 = arith.mulf %84, %88 : vector<16x32xf32>
    %90 = vector.broadcast %54 : vector<1x32xf32> to vector<16x32xf32>
    %91 = arith.mulf %89, %90 : vector<16x32xf32>
    %92 = vector.broadcast %55 : vector<1x32xf32> to vector<16x32xf32>
    %93 = arith.addf %91, %92 : vector<16x32xf32>
    %cst_31 = arith.constant 0.000000e+00 : f32
    %94 = vector.broadcast %cst_31 : f32 to vector<16x32xf32>
    %95 = arith.maximumf %93, %94 : vector<16x32xf32>
    %96 = vector.extract_strided_slice %5 {offsets = [64, 0], sizes = [32, 32], strides = [1, 1]} : vector<128x32xf32> to vector<32x32xf32>
    %97 = vector.extract_strided_slice %5 {offsets = [96, 0], sizes = [32, 32], strides = [1, 1]} : vector<128x32xf32> to vector<32x32xf32>
    %98 = vector.extract_strided_slice %2 {offsets = [6, 0], sizes = [1, 32], strides = [1, 1]} : vector<9x32xf32> to vector<1x32xf32>
    %99 = vector.extract_strided_slice %2 {offsets = [7, 0], sizes = [1, 32], strides = [1, 1]} : vector<9x32xf32> to vector<1x32xf32>
    %100 = vector.extract_strided_slice %2 {offsets = [8, 0], sizes = [1, 32], strides = [1, 1]} : vector<9x32xf32> to vector<1x32xf32>
    %cst_32 = arith.constant dense<0.000000e+00> : vector<16x32xf32>
    %101 = tpu.matmul %95, %96, %cst_32 {dimension_numbers = #tpu.dot_dimension_numbers<[1], [0], [0], [1], [0, 0, 1, 1], [], []>} : vector<16x32xf32>, vector<32x32xf32>, vector<16x32xf32> -> vector<16x32xf32>
    %cst_33 = arith.constant dense<0.000000e+00> : vector<16x32xf32>
    %102 = tpu.matmul %95, %97, %cst_33 {dimension_numbers = #tpu.dot_dimension_numbers<[1], [0], [0], [1], [0, 0, 1, 1], [], []>} : vector<16x32xf32>, vector<32x32xf32>, vector<16x32xf32> -> vector<16x32xf32>
    %103 = tpu.concatenate %101, %102 in 0 : vector<16x32xf32>, vector<16x32xf32> -> vector<32x32xf32>
    %cst_34 = arith.constant dense<0.000000e+00> : vector<32x32xf32>
    %104 = tpu.matmul %0, %103, %cst_34 {dimension_numbers = #tpu.dot_dimension_numbers<[1], [0], [0], [1], [0, 0, 1, 1], [], []>} : vector<32x32xf32>, vector<32x32xf32>, vector<32x32xf32> -> vector<32x32xf32>
    %105 = vector.broadcast %98 : vector<1x32xf32> to vector<32x32xf32>
    %106 = arith.addf %104, %105 : vector<32x32xf32>
    %cst_35 = arith.constant 0.000000e+00 : f32
    %107 = vector.broadcast %cst_35 : f32 to vector<32x32xf32>
    %108 = arith.maximumf %106, %107 : vector<32x32xf32>
    %109 = vector.shape_cast %1 : vector<32x16xf32> to vector<32x16x1xf32>
    %110 = vector.shape_cast %108 : vector<32x32xf32> to vector<32x1x32xf32>
    %111 = vector.broadcast %109 : vector<32x16x1xf32> to vector<32x16x32xf32>
    %112 = vector.broadcast %110 : vector<32x1x32xf32> to vector<32x16x32xf32>
    %113 = arith.mulf %111, %112 : vector<32x16x32xf32>
    %cst_36 = arith.constant dense<0xFF800000> : vector<16x32xf32>
    %114 = vector.multi_reduction <maximumf>, %113, %cst_36 [0] : vector<32x16x32xf32> to vector<16x32xf32>
    %cst_37 = arith.constant dense<0.000000e+00> : vector<32xf32>
    %115 = vector.multi_reduction <add>, %114, %cst_37 [0] : vector<16x32xf32> to vector<32xf32>
    %116 = vector.shape_cast %115 : vector<32xf32> to vector<1x32xf32>
    %cst_38 = arith.constant 1.600000e+01 : f32
    %117 = vector.broadcast %cst_38 : f32 to vector<1x32xf32>
    %118 = arith.divf %116, %117 : vector<1x32xf32>
    %119 = arith.mulf %114, %114 : vector<16x32xf32>
    %cst_39 = arith.constant dense<0.000000e+00> : vector<32xf32>
    %120 = vector.multi_reduction <add>, %119, %cst_39 [0] : vector<16x32xf32> to vector<32xf32>
    %121 = vector.shape_cast %120 : vector<32xf32> to vector<1x32xf32>
    %cst_40 = arith.constant 1.600000e+01 : f32
    %122 = vector.broadcast %cst_40 : f32 to vector<1x32xf32>
    %123 = arith.divf %121, %122 : vector<1x32xf32>
    %124 = arith.mulf %118, %118 : vector<1x32xf32>
    %125 = arith.subf %123, %124 : vector<1x32xf32>
    %cst_41 = arith.constant 0.000000e+00 : f32
    %126 = vector.broadcast %cst_41 : f32 to vector<1x32xf32>
    %127 = arith.maximumf %125, %126 : vector<1x32xf32>
    %128 = vector.broadcast %118 : vector<1x32xf32> to vector<16x32xf32>
    %129 = arith.subf %114, %128 : vector<16x32xf32>
    %cst_42 = arith.constant 9.99999974E-6 : f32
    %130 = vector.broadcast %cst_42 : f32 to vector<1x32xf32>
    %131 = arith.addf %127, %130 : vector<1x32xf32>
    %132 = math.rsqrt %131 : vector<1x32xf32>
    %133 = vector.broadcast %132 : vector<1x32xf32> to vector<16x32xf32>
    %134 = arith.mulf %129, %133 : vector<16x32xf32>
    %135 = vector.broadcast %99 : vector<1x32xf32> to vector<16x32xf32>
    %136 = arith.mulf %134, %135 : vector<16x32xf32>
    %137 = vector.broadcast %100 : vector<1x32xf32> to vector<16x32xf32>
    %138 = arith.addf %136, %137 : vector<16x32xf32>
    %c0_43 = arith.constant 0 : index
    %c0_44 = arith.constant 0 : index
    %139 = vector.load %arg2[%c0_43, %c0_44] : memref<2x16xf32, #tpu.memory_space<vmem>>, vector<2x16xf32>
    %cst_45 = arith.constant dense<0.000000e+00> : vector<2x32xf32>
    %140 = tpu.matmul %139, %138, %cst_45 {dimension_numbers = #tpu.dot_dimension_numbers<[1], [0], [0], [1], [0, 0, 1, 1], [], []>} : vector<2x16xf32>, vector<16x32xf32>, vector<2x32xf32> -> vector<2x32xf32>
    %c0_46 = arith.constant 0 : index
    %c0_47 = arith.constant 0 : index
    %141 = vector.load %arg6[%c0_46, %c0_47] : memref<32x2xf32, #tpu.memory_space<vmem>>, vector<32x2xf32>
    %cst_48 = arith.constant dense<0.000000e+00> : vector<2x2xf32>
    %142 = tpu.matmul %140, %141, %cst_48 {dimension_numbers = #tpu.dot_dimension_numbers<[1], [0], [0], [1], [0, 0, 1, 1], [], []>} : vector<2x32xf32>, vector<32x2xf32>, vector<2x2xf32> -> vector<2x2xf32>
    %c0_49 = arith.constant 0 : index
    %c0_50 = arith.constant 0 : index
    %143 = vector.load %arg7[%c0_49, %c0_50] : memref<1x2xf32, #tpu.memory_space<vmem>>, vector<1x2xf32>
    %144 = vector.broadcast %143 : vector<1x2xf32> to vector<2x2xf32>
    %145 = arith.addf %142, %144 : vector<2x2xf32>
    %cst_51 = arith.constant dense<0xFF800000> : vector<2xf32>
    %146 = vector.multi_reduction <maximumf>, %145, %cst_51 [1] : vector<2x2xf32> to vector<2xf32>
    %147 = vector.shape_cast %146 : vector<2xf32> to vector<2x1xf32>
    %148 = vector.broadcast %147 : vector<2x1xf32> to vector<2x2xf32>
    %149 = arith.subf %145, %148 : vector<2x2xf32>
    %150 = math.exp %149 : vector<2x2xf32>
    %cst_52 = arith.constant dense<0.000000e+00> : vector<2xf32>
    %151 = vector.multi_reduction <add>, %150, %cst_52 [1] : vector<2x2xf32> to vector<2xf32>
    %152 = vector.shape_cast %151 : vector<2xf32> to vector<2x1xf32>
    %153 = vector.broadcast %152 : vector<2x1xf32> to vector<2x2xf32>
    %154 = arith.divf %150, %153 : vector<2x2xf32>
    %c0_53 = arith.constant 0 : index
    %c0_54 = arith.constant 0 : index
    %155 = vector.load %arg8[%c0_53, %c0_54] : memref<2x2xf32, #tpu.memory_space<vmem>>, vector<2x2xf32>
    tpu.vector_store %arg8[%c0_53, %c0_54], %154 {strides = array<i32>} : memref<2x2xf32, #tpu.memory_space<vmem>>, vector<2x2xf32>,
    return
  }
}

</mosaic_0001>

<llo_original>
// kernel: graph_network_forward.1
$region0: #{graph_network_forward.1}
  #allocation0 [shape = 'u32[]', space=smem, size = 0x4, offset = 0x4, fixed_abs, tag = 'smem constant byte address 0x4 - core index']
  #allocation1 [shape = 'u32[144,128]{1,0:T(1,128)}', space=vmem, size = 0x12000, scoped, tag = 'internal scratch']
  %s0 = inlined_call_operand.vmem [shape: f32[16,16], index: 0, kind: input, shape index: {}]
  %s1 = inlined_call_operand.vmem [shape: f32[32,32], index: 1, kind: input, shape index: {}]
  %s2 = inlined_call_operand.vmem [shape: f32[2,16], index: 2, kind: input, shape index: {}]
  %s3 = inlined_call_operand.vmem [shape: f32[32,32], index: 3, kind: input, shape index: {}]
  %s4 = inlined_call_operand.vmem [shape: f32[128,32], index: 4, kind: input, shape index: {}]
  %s5 = inlined_call_operand.vmem [shape: f32[9,32], index: 5, kind: input, shape index: {}]
  %s6 = inlined_call_operand.vmem [shape: f32[32,2], index: 6, kind: input, shape index: {}]
  %s7 = inlined_call_operand.vmem [shape: f32[1,2], index: 7, kind: input, shape index: {}]
  %s8 = inlined_call_operand.hbm [shape: f32[2,2], index: 8, kind: output, shape index: {}]
  %s9 = sld [smem:[#allocation0]]
  $region42: #{graph_network_forward.1} parent=0
    _
  %s11 = ssub.s32 1, %s9
  %s12 = scalar_select 0, %s11, %s9
  $region1: #{graph_network_forward.1} parent=0
    #allocation2 [shape = 'u8[1024]{0}', space=vmem, size = 0x400, scoped, tag = 'output window, operand 0, single buffered']
    #allocation3 [shape = 's32[1]{0}', space=sflag, size = 0x4, scoped, tag = 'scoped memory for graph_network_forward.1']
    %13 = vsyncpa [#allocation3], 0
    // Predicated region
    $region2: #{graph_network_forward.1} parent=1 // pred_check
      _
    $region3: #{graph_network_forward.1} parent=1 // pred_check_branch
      %15 = sbr.rel (0) target = $region5
    $region4: #{graph_network_forward.1} parent=1 // pred_region
      _
    $region5: #{graph_network_forward.1} parent=1 // pred_fallthru
      _
    // Predicated region
    $region6: #{graph_network_forward.1} parent=1 // pred_check
      _
    $region7: #{graph_network_forward.1} parent=1 // pred_check_branch
      %17 = sbr.rel (0) target = $region9
    $region8: #{graph_network_forward.1} parent=1 // pred_region
      _
    $region9: #{graph_network_forward.1} parent=1 // pred_fallthru
      _
    // Predicated region
    $region10: #{graph_network_forward.1} parent=1 // pred_check
      _
    $region11: #{graph_network_forward.1} parent=1 // pred_check_branch
      %19 = sbr.rel (0) target = $region13
    $region12: #{graph_network_forward.1} parent=1 // pred_region
      _
    $region13: #{graph_network_forward.1} parent=1 // pred_fallthru
      _
    // Predicated region
    $region14: #{graph_network_forward.1} parent=1 // pred_check
      _
    $region15: #{graph_network_forward.1} parent=1 // pred_check_branch
      %21 = sbr.rel (0) target = $region17
    $region16: #{graph_network_forward.1} parent=1 // pred_region
      _
    $region17: #{graph_network_forward.1} parent=1 // pred_fallthru
      _
    // Predicated region
    $region18: #{graph_network_forward.1} parent=1 // pred_check
      _
    $region19: #{graph_network_forward.1} parent=1 // pred_check_branch
      %23 = sbr.rel (0) target = $region21
    $region20: #{graph_network_forward.1} parent=1 // pred_region
      _
    $region21: #{graph_network_forward.1} parent=1 // pred_fallthru
      _
    // Predicated region
    $region22: #{graph_network_forward.1} parent=1 // pred_check
      _
    $region23: #{graph_network_forward.1} parent=1 // pred_check_branch
      %25 = sbr.rel (0) target = $region25
    $region24: #{graph_network_forward.1} parent=1 // pred_region
      _
    $region25: #{graph_network_forward.1} parent=1 // pred_fallthru
      _
    // Predicated region
    $region26: #{graph_network_forward.1} parent=1 // pred_check
      _
    $region27: #{graph_network_forward.1} parent=1 // pred_check_branch
      %27 = sbr.rel (0) target = $region29
    $region28: #{graph_network_forward.1} parent=1 // pred_region
      _
    $region29: #{graph_network_forward.1} parent=1 // pred_fallthru
      _
    // Predicated region
    $region30: #{graph_network_forward.1} parent=1 // pred_check
      _
    $region31: #{graph_network_forward.1} parent=1 // pred_check_branch
      %29 = sbr.rel (0) target = $region33
    $region32: #{graph_network_forward.1} parent=1 // pred_region
      _
    $region33: #{graph_network_forward.1} parent=1 // pred_fallthru
      _
    %v30 = vld [vmem:[%s1] sm:$0xff]
    %v31 = vld [vmem:[%s1 + $0x8] sm:$0xff]
    %v32 = vld [vmem:[%s1 + $0x10] sm:$0xff]
    %v33 = vld [vmem:[%s1 + $0x18] sm:$0xff]
    %v34 = vld [vmem:[%s5] sm:$0xff]
    %v35 = vld [vmem:[%s5 + $0x8] sm:$0x1]
    %v36 = vld [vmem:[%s0] sm:$0xff]
    %v37 = vld [vmem:[%s0 + $0x8] sm:$0xff]
    %v38 = vld [vmem:[%s3] sm:$0xff]
    %v39 = vld [vmem:[%s3 + $0x8] sm:$0xff]
    %v40 = vld [vmem:[%s3 + $0x10] sm:$0xff]
    %v41 = vld [vmem:[%s3 + $0x18] sm:$0xff]
    %v42 = vld [vmem:[%s4] sm:$0xff]
    %v43 = vld [vmem:[%s4 + $0x8] sm:$0xff]
    %v44 = vld [vmem:[%s4 + $0x10] sm:$0xff]
    %v45 = vld [vmem:[%s4 + $0x18] sm:$0xff]
    %v46 = vld [vmem:[%s4 + $0x20] sm:$0xff]
    %v47 = vld [vmem:[%s4 + $0x28] sm:$0xff]
    %v48 = vld [vmem:[%s4 + $0x30] sm:$0xff]
    %v49 = vld [vmem:[%s4 + $0x38] sm:$0xff]
    %v50 = vld [vmem:[%s4 + $0x40] sm:$0xff]
    %v51 = vld [vmem:[%s4 + $0x48] sm:$0xff]
    %v52 = vld [vmem:[%s4 + $0x50] sm:$0xff]
    %v53 = vld [vmem:[%s4 + $0x58] sm:$0xff]
    %v54 = vld [vmem:[%s4 + $0x60] sm:$0xff]
    %v55 = vld [vmem:[%s4 + $0x68] sm:$0xff]
    %v56 = vld [vmem:[%s4 + $0x70] sm:$0xff]
    %v57 = vld [vmem:[%s4 + $0x78] sm:$0xff]
    %vm58 = vcmask 130048
    %v60 = vsel %vm58, %v36, 0
    %v63 = vsel %vm58, %v37, 0
    %65 = vmatprep.subr.mxu0 0.0
    %66 = vmatpush1.msra.mxu0 %v38
    %67 = vmatprep.subr.mxu0 0.0
    %68 = vmatpush1.msra.mxu0 %v39
    %69 = vmatprep.subr.mxu0 0.0
    %70 = vmatpush1.msra.mxu0 0.0
    %71 = vmatprep.subr.mxu0 0.0
    %72 = vmatpush1.msra.mxu0 0.0
    %73 = vmatprep.subr.mxu0 0.0
    %74 = vmatpush1.msra.mxu0 0.0
    %75 = vmatprep.subr.mxu0 0.0
    %76 = vmatpush1.msra.mxu0 0.0
    %77 = vmatprep.subr.mxu0 0.0
    %78 = vmatpush1.msra.mxu0 0.0
    %79 = vmatprep.subr.mxu0 0.0
    %80 = vmatpush1.msra.mxu0 0.0
    %81 = vmatprep.subr.mxu0 0.0
    %82 = vmatpush1.msra.mxu0 0.0
    %83 = vmatprep.subr.mxu0 0.0
    %84 = vmatpush1.msra.mxu0 0.0
    %85 = vmatprep.subr.mxu0 0.0
    %86 = vmatpush1.msra.mxu0 0.0
    %87 = vmatprep.subr.mxu0 0.0
    %88 = vmatpush1.msra.mxu0 0.0
    %89 = vmatprep.subr.mxu0 0.0
    %90 = vmatpush1.msra.mxu0 0.0
    %91 = vmatprep.subr.mxu0 0.0
    %92 = vmatpush1.msra.mxu0 0.0
    %93 = vmatprep.subr.mxu0 0.0
    %94 = vmatpush1.msra.mxu0 0.0
    %95 = vmatprep.subr.mxu0 0.0
    %96 = vmatpush1.msra.mxu0 0.0
    %97 = vmatprep.subr.mxu0 0.0
    %98 = vmatpush1.msra.mxu0 0.0
    %99 = vmatprep.subr.mxu0 0.0
    %100 = vmatpush1.msra.mxu0 0.0
    %101 = vmatprep.subr.mxu0 0.0
    %102 = vmatpush1.msra.mxu0 0.0
    %103 = vmatprep.subr.mxu0 0.0
    %104 = vmatpush1.msra.mxu0 0.0
    %105 = vmatprep.subr.mxu0 0.0
    %106 = vmatpush1.msra.mxu0 0.0
    %107 = vmatprep.subr.mxu0 0.0
    %108 = vmatpush1.msra.mxu0 0.0
    %109 = vmatprep.subr.mxu0 0.0
    %110 = vmatpush1.msra.mxu0 0.0
    %111 = vmatprep.subr.mxu0 0.0
    %112 = vmatpush1.msra.mxu0 0.0
    %113 = vmatprep.subr.mxu0 0.0
    %114 = vmatpush1.msra.mxu0 0.0
    %115 = vmatprep.subr.mxu0 0.0
    %116 = vmatpush1.msra.mxu0 0.0
    %117 = vmatprep.subr.mxu0 0.0
    %118 = vmatpush1.msra.mxu0 0.0
    %119 = vmatprep.subr.mxu0 0.0
    %120 = vmatpush1.msra.mxu0 0.0
    %121 = vmatprep.subr.mxu0 0.0
    %122 = vmatpush1.msra.mxu0 0.0
    %123 = vmatprep.subr.mxu0 0.0
    %124 = vmatpush1.msra.mxu0 0.0
    %125 = vmatprep.subr.mxu0 0.0
    %126 = vmatpush1.msra.mxu0 0.0
    %127 = vmatprep.subr.mxu0 0.0
    %128 = vmatpush1.msra.mxu0 0.0
    %129 = vmatprep.mubr.f32.mxu0 0.0
    %130 = vmatmul.mubr.f32.gmra.mrb[0].mxu0 %v60
    %v131 = vpop.f32.mrb[0].mxu0
    %v132 = vadd.f32 0.0, %v131
    %v133 = vpop.f32.mrb[0].mxu0
    %134 = vmatprep.mubr.f32.mxu0 0.0
    %135 = vmatmul.mubr.f32.gmra.mrb[0].mxu0 %v63
    %v136 = vpop.f32.mrb[0].mxu0
    %v137 = vadd.f32 0.0, %v136
    %v138 = vpop.f32.mrb[0].mxu0
    %139 = vdwg.mxu0
    %140 = vmatprep.subr.mxu0 0.0
    %141 = vmatpush1.msra.mxu0 %v40
    %142 = vmatprep.subr.mxu0 0.0
    %143 = vmatpush1.msra.mxu0 %v41
    %144 = vmatprep.subr.mxu0 0.0
    %145 = vmatpush1.msra.mxu0 0.0
    %146 = vmatprep.subr.mxu0 0.0
    %147 = vmatpush1.msra.mxu0 0.0
    %148 = vmatprep.subr.mxu0 0.0
    %149 = vmatpush1.msra.mxu0 0.0
    %150 = vmatprep.subr.mxu0 0.0
    %151 = vmatpush1.msra.mxu0 0.0
    %152 = vmatprep.subr.mxu0 0.0
    %153 = vmatpush1.msra.mxu0 0.0
    %154 = vmatprep.subr.mxu0 0.0
    %155 = vmatpush1.msra.mxu0 0.0
    %156 = vmatprep.subr.mxu0 0.0
    %157 = vmatpush1.msra.mxu0 0.0
    %158 = vmatprep.subr.mxu0 0.0
    %159 = vmatpush1.msra.mxu0 0.0
    %160 = vmatprep.subr.mxu0 0.0
    %161 = vmatpush1.msra.mxu0 0.0
    %162 = vmatprep.subr.mxu0 0.0
    %163 = vmatpush1.msra.mxu0 0.0
    %164 = vmatprep.subr.mxu0 0.0
    %165 = vmatpush1.msra.mxu0 0.0
    %166 = vmatprep.subr.mxu0 0.0
    %167 = vmatpush1.msra.mxu0 0.0
    %168 = vmatprep.subr.mxu0 0.0
    %169 = vmatpush1.msra.mxu0 0.0
    %170 = vmatprep.subr.mxu0 0.0
    %171 = vmatpush1.msra.mxu0 0.0
    %172 = vmatprep.subr.mxu0 0.0
    %173 = vmatpush1.msra.mxu0 0.0
    %174 = vmatprep.subr.mxu0 0.0
    %175 = vmatpush1.msra.mxu0 0.0
    %176 = vmatprep.subr.mxu0 0.0
    %177 = vmatpush1.msra.mxu0 0.0
    %178 = vmatprep.subr.mxu0 0.0
    %179 = vmatpush1.msra.mxu0 0.0
    %180 = vmatprep.subr.mxu0 0.0
    %181 = vmatpush1.msra.mxu0 0.0
    %182 = vmatprep.subr.mxu0 0.0
    %183 = vmatpush1.msra.mxu0 0.0
    %184 = vmatprep.subr.mxu0 0.0
    %185 = vmatpush1.msra.mxu0 0.0
    %186 = vmatprep.subr.mxu0 0.0
    %187 = vmatpush1.msra.mxu0 0.0
    %188 = vmatprep.subr.mxu0 0.0
    %189 = vmatpush1.msra.mxu0 0.0
    %190 = vmatprep.subr.mxu0 0.0
    %191 = vmatpush1.msra.mxu0 0.0
    %192 = vmatprep.subr.mxu0 0.0
    %193 = vmatpush1.msra.mxu0 0.0
    %194 = vmatprep.subr.mxu0 0.0
    %195 = vmatpush1.msra.mxu0 0.0
    %196 = vmatprep.subr.mxu0 0.0
    %197 = vmatpush1.msra.mxu0 0.0
    %198 = vmatprep.subr.mxu0 0.0
    %199 = vmatpush1.msra.mxu0 0.0
    %200 = vmatprep.subr.mxu0 0.0
    %201 = vmatpush1.msra.mxu0 0.0
    %202 = vmatprep.subr.mxu0 0.0
    %203 = vmatpush1.msra.mxu0 0.0
    %204 = vmatprep.mubr.f32.mxu0 0.0
    %205 = vmatmul.mubr.f32.gmra.mrb[0].mxu0 %v60
    %v206 = vpop.f32.mrb[0].mxu0
    %v207 = vadd.f32 0.0, %v206
    %v208 = vpop.f32.mrb[0].mxu0
    %209 = vmatprep.mubr.f32.mxu0 0.0
    %210 = vmatmul.mubr.f32.gmra.mrb[0].mxu0 %v63
    %v211 = vpop.f32.mrb[0].mxu0
    %v212 = vadd.f32 0.0, %v211
    %v213 = vpop.f32.mrb[0].mxu0
    %214 = vdwg.mxu0
    %v215 = vlaneseq
    %v216 = vshrl.u32 %v215, 7
    %v217 = vsub.s32 0, %v216
    %v218 = vrot.slane %v34, %v217
    %vm219 = vcmask 261120
    %v221 = vsel %vm219, %v30, 0
    %v224 = vsel %vm219, %v31, 0
    %v227 = vsel %vm219, %v32, 0
    %v230 = vsel %vm219, %v33, 0
    %232 = vmatprep.subr.mxu0 0.0
    %233 = vmatpush1.msra.mxu0 %v132
    %234 = vmatprep.subr.mxu0 0.0
    %235 = vmatpush1.msra.mxu0 %v137
    %236 = vmatprep.subr.mxu0 0.0
    %237 = vmatpush1.msra.mxu0 %v207
    %238 = vmatprep.subr.mxu0 0.0
    %239 = vmatpush1.msra.mxu0 %v212
    %240 = vmatprep.subr.mxu0 0.0
    %241 = vmatpush1.msra.mxu0 0.0
    %242 = vmatprep.subr.mxu0 0.0
    %243 = vmatpush1.msra.mxu0 0.0
    %244 = vmatprep.subr.mxu0 0.0
    %245 = vmatpush1.msra.mxu0 0.0
    %246 = vmatprep.subr.mxu0 0.0
    %247 = vmatpush1.msra.mxu0 0.0
    %248 = vmatprep.subr.mxu0 0.0
    %249 = vmatpush1.msra.mxu0 0.0
    %250 = vmatprep.subr.mxu0 0.0
    %251 = vmatpush1.msra.mxu0 0.0
    %252 = vmatprep.subr.mxu0 0.0
    %253 = vmatpush1.msra.mxu0 0.0
    %254 = vmatprep.subr.mxu0 0.0
    %255 = vmatpush1.msra.mxu0 0.0
    %256 = vmatprep.subr.mxu0 0.0
    %257 = vmatpush1.msra.mxu0 0.0
    %258 = vmatprep.subr.mxu0 0.0
    %259 = vmatpush1.msra.mxu0 0.0
    %260 = vmatprep.subr.mxu0 0.0
    %261 = vmatpush1.msra.mxu0 0.0
    %262 = vmatprep.subr.mxu0 0.0
    %263 = vmatpush1.msra.mxu0 0.0
    %264 = vmatprep.subr.mxu0 0.0
    %265 = vmatpush1.msra.mxu0 0.0
    %266 = vmatprep.subr.mxu0 0.0
    %267 = vmatpush1.msra.mxu0 0.0
    %268 = vmatprep.subr.mxu0 0.0
    %269 = vmatpush1.msra.mxu0 0.0
    %270 = vmatprep.subr.mxu0 0.0
    %271 = vmatpush1.msra.mxu0 0.0
    %272 = vmatprep.subr.mxu0 0.0
    %273 = vmatpush1.msra.mxu0 0.0
    %274 = vmatprep.subr.mxu0 0.0
    %275 = vmatpush1.msra.mxu0 0.0
    %276 = vmatprep.subr.mxu0 0.0
    %277 = vmatpush1.msra.mxu0 0.0
    %278 = vmatprep.subr.mxu0 0.0
    %279 = vmatpush1.msra.mxu0 0.0
    %280 = vmatprep.subr.mxu0 0.0
    %281 = vmatpush1.msra.mxu0 0.0
    %282 = vmatprep.subr.mxu0 0.0
    %283 = vmatpush1.msra.mxu0 0.0
    %284 = vmatprep.subr.mxu0 0.0
    %285 = vmatpush1.msra.mxu0 0.0
    %286 = vmatprep.subr.mxu0 0.0
    %287 = vmatpush1.msra.mxu0 0.0
    %288 = vmatprep.subr.mxu0 0.0
    %289 = vmatpush1.msra.mxu0 0.0
    %290 = vmatprep.subr.mxu0 0.0
    %291 = vmatpush1.msra.mxu0 0.0
    %292 = vmatprep.subr.mxu0 0.0
    %293 = vmatpush1.msra.mxu0 0.0
    %294 = vmatprep.subr.mxu0 0.0
    %295 = vmatpush1.msra.mxu0 0.0
    %296 = vmatprep.mubr.f32.mxu0 0.0
    %297 = vmatmul.mubr.f32.gmra.mrb[0].mxu0 %v221
    %v298 = vpop.f32.mrb[0].mxu0
    %v299 = vadd.f32 %v218, %v298
    %v300 = vpop.f32.mrb[0].mxu0
    %301 = vmatprep.mubr.f32.mxu0 0.0
    %302 = vmatmul.mubr.f32.gmra.mrb[0].mxu0 %v224
    %v303 = vpop.f32.mrb[0].mxu0
    %v304 = vadd.f32 %v218, %v303
    %v305 = vpop.f32.mrb[0].mxu0
    %306 = vmatprep.mubr.f32.mxu0 0.0
    %307 = vmatmul.mubr.f32.gmra.mrb[0].mxu0 %v227
    %v308 = vpop.f32.mrb[0].mxu0
    %v309 = vadd.f32 %v218, %v308
    %v310 = vpop.f32.mrb[0].mxu0
    %311 = vmatprep.mubr.f32.mxu0 0.0
    %312 = vmatmul.mubr.f32.gmra.mrb[0].mxu0 %v230
    %v313 = vpop.f32.mrb[0].mxu0
    %v314 = vadd.f32 %v218, %v313
    %v315 = vpop.f32.mrb[0].mxu0
    %316 = vdwg.mxu0
    %v317 = vmax.f32 %v299, 0.0
    %v318 = vmax.f32 %v304, 0.0
    %v319 = vmax.f32 %v309, 0.0
    %v320 = vmax.f32 %v314, 0.0
    %v321 = vlaneseq
    %v322 = vshrl.u32 %v321, 7
    %v323 = vsub.s32 0, %v322
    %v324 = vrot.slane %v30, %v323
    %326 = vbcast.lane.b32.xlu0 %v324, 256
    %v327 = vpop.permute.xlu0 %326
    %s329 = sor.u32 256, 8
    %330 = vbcast.lane.b32.xlu0 %v324, %s329
    %v331 = vpop.permute.xlu0 %330
    %v332 = vlaneseq
    %v333 = vshrl.u32 %v332, 7
    %v334 = vsub.s32 1, %v333
    %v335 = vrot.slane %v30, %v334
    %337 = vbcast.lane.b32.xlu0 %v335, 256
    %v338 = vpop.permute.xlu0 %337
    %s340 = sor.u32 256, 8
    %341 = vbcast.lane.b32.xlu0 %v335, %s340
    %v342 = vpop.permute.xlu0 %341
    %v343 = vlaneseq
    %v344 = vshrl.u32 %v343, 7
    %v345 = vsub.s32 2, %v344
    %v346 = vrot.slane %v30, %v345
    %348 = vbcast.lane.b32.xlu0 %v346, 256
    %v349 = vpop.permute.xlu0 %348
    %s351 = sor.u32 256, 8
    %352 = vbcast.lane.b32.xlu0 %v346, %s351
    %v353 = vpop.permute.xlu0 %352
    %v354 = vlaneseq
    %v355 = vshrl.u32 %v354, 7
    %v356 = vsub.s32 3, %v355
    %v357 = vrot.slane %v30, %v356
    %359 = vbcast.lane.b32.xlu0 %v357, 256
    %v360 = vpop.permute.xlu0 %359
    %s362 = sor.u32 256, 8
    %363 = vbcast.lane.b32.xlu0 %v357, %s362
    %v364 = vpop.permute.xlu0 %363
    %v365 = vlaneseq
    %v366 = vshrl.u32 %v365, 7
    %v367 = vsub.s32 4, %v366
    %v368 = vrot.slane %v30, %v367
    %370 = vbcast.lane.b32.xlu0 %v368, 256
    %v371 = vpop.permute.xlu0 %370
    %s373 = sor.u32 256, 8
    %374 = vbcast.lane.b32.xlu0 %v368, %s373
    %v375 = vpop.permute.xlu0 %374
    %v376 = vlaneseq
    %v377 = vshrl.u32 %v376, 7
    %v378 = vsub.s32 5, %v377
    %v379 = vrot.slane %v30, %v378
    %381 = vbcast.lane.b32.xlu0 %v379, 256
    %v382 = vpop.permute.xlu0 %381
    %s384 = sor.u32 256, 8
    %385 = vbcast.lane.b32.xlu0 %v379, %s384
    %v386 = vpop.permute.xlu0 %385
    %v387 = vlaneseq
    %v388 = vshrl.u32 %v387, 7
    %v389 = vsub.s32 6, %v388
    %v390 = vrot.slane %v30, %v389
    %392 = vbcast.lane.b32.xlu0 %v390, 256
    %v393 = vpop.permute.xlu0 %392
    %s395 = sor.u32 256, 8
    %396 = vbcast.lane.b32.xlu0 %v390, %s395
    %v397 = vpop.permute.xlu0 %396
    %v398 = vlaneseq
    %v399 = vshrl.u32 %v398, 7
    %v400 = vsub.s32 7, %v399
    %v401 = vrot.slane %v30, %v400
    %403 = vbcast.lane.b32.xlu0 %v401, 256
    %v404 = vpop.permute.xlu0 %403
    %s406 = sor.u32 256, 8
    %407 = vbcast.lane.b32.xlu0 %v401, %s406
    %v408 = vpop.permute.xlu0 %407
    %v409 = vlaneseq
    %v410 = vshrl.u32 %v409, 7
    %v411 = vsub.s32 0, %v410
    %v412 = vrot.slane %v31, %v411
    %414 = vbcast.lane.b32.xlu0 %v412, 256
    %v415 = vpop.permute.xlu0 %414
    %s417 = sor.u32 256, 8
    %418 = vbcast.lane.b32.xlu0 %v412, %s417
    %v419 = vpop.permute.xlu0 %418
    %v420 = vlaneseq
    %v421 = vshrl.u32 %v420, 7
    %v422 = vsub.s32 1, %v421
    %v423 = vrot.slane %v31, %v422
    %425 = vbcast.lane.b32.xlu0 %v423, 256
    %v426 = vpop.permute.xlu0 %425
    %s428 = sor.u32 256, 8
    %429 = vbcast.lane.b32.xlu0 %v423, %s428
    %v430 = vpop.permute.xlu0 %429
    %v431 = vlaneseq
    %v432 = vshrl.u32 %v431, 7
    %v433 = vsub.s32 2, %v432
    %v434 = vrot.slane %v31, %v433
    %436 = vbcast.lane.b32.xlu0 %v434, 256
    %v437 = vpop.permute.xlu0 %436
    %s439 = sor.u32 256, 8
    %440 = vbcast.lane.b32.xlu0 %v434, %s439
    %v441 = vpop.permute.xlu0 %440
    %v442 = vlaneseq
    %v443 = vshrl.u32 %v442, 7
    %v444 = vsub.s32 3, %v443
    %v445 = vrot.slane %v31, %v444
    %447 = vbcast.lane.b32.xlu0 %v445, 256
    %v448 = vpop.permute.xlu0 %447
    %s450 = sor.u32 256, 8
    %451 = vbcast.lane.b32.xlu0 %v445, %s450
    %v452 = vpop.permute.xlu0 %451
    %v453 = vlaneseq
    %v454 = vshrl.u32 %v453, 7
    %v455 = vsub.s32 4, %v454
    %v456 = vrot.slane %v31, %v455
    %458 = vbcast.lane.b32.xlu0 %v456, 256
    %v459 = vpop.permute.xlu0 %458
    %s461 = sor.u32 256, 8
    %462 = vbcast.lane.b32.xlu0 %v456, %s461
    %v463 = vpop.permute.xlu0 %462
    %v464 = vlaneseq
    %v465 = vshrl.u32 %v464, 7
    %v466 = vsub.s32 5, %v465
    %v467 = vrot.slane %v31, %v466
    %469 = vbcast.lane.b32.xlu0 %v467, 256
    %v470 = vpop.permute.xlu0 %469
    %s472 = sor.u32 256, 8
    %473 = vbcast.lane.b32.xlu0 %v467, %s472
    %v474 = vpop.permute.xlu0 %473
    %v475 = vlaneseq
    %v476 = vshrl.u32 %v475, 7
    %v477 = vsub.s32 6, %v476
    %v478 = vrot.slane %v31, %v477
    %480 = vbcast.lane.b32.xlu0 %v478, 256
    %v481 = vpop.permute.xlu0 %480
    %s483 = sor.u32 256, 8
    %484 = vbcast.lane.b32.xlu0 %v478, %s483
    %v485 = vpop.permute.xlu0 %484
    %v486 = vlaneseq
    %v487 = vshrl.u32 %v486, 7
    %v488 = vsub.s32 7, %v487
    %v489 = vrot.slane %v31, %v488
    %491 = vbcast.lane.b32.xlu0 %v489, 256
    %v492 = vpop.permute.xlu0 %491
    %s494 = sor.u32 256, 8
    %495 = vbcast.lane.b32.xlu0 %v489, %s494
    %v496 = vpop.permute.xlu0 %495
    %v497 = vlaneseq
    %v498 = vshrl.u32 %v497, 7
    %v499 = vsub.s32 0, %v498
    %v500 = vrot.slane %v32, %v499
    %502 = vbcast.lane.b32.xlu0 %v500, 256
    %v503 = vpop.permute.xlu0 %502
    %s505 = sor.u32 256, 8
    %506 = vbcast.lane.b32.xlu0 %v500, %s505
    %v507 = vpop.permute.xlu0 %506
    %v508 = vlaneseq
    %v509 = vshrl.u32 %v508, 7
    %v510 = vsub.s32 1, %v509
    %v511 = vrot.slane %v32, %v510
    %513 = vbcast.lane.b32.xlu0 %v511, 256
    %v514 = vpop.permute.xlu0 %513
    %s516 = sor.u32 256, 8
    %517 = vbcast.lane.b32.xlu0 %v511, %s516
    %v518 = vpop.permute.xlu0 %517
    %v519 = vlaneseq
    %v520 = vshrl.u32 %v519, 7
    %v521 = vsub.s32 2, %v520
    %v522 = vrot.slane %v32, %v521
    %524 = vbcast.lane.b32.xlu0 %v522, 256
    %v525 = vpop.permute.xlu0 %524
    %s527 = sor.u32 256, 8
    %528 = vbcast.lane.b32.xlu0 %v522, %s527
    %v529 = vpop.permute.xlu0 %528
    %v530 = vlaneseq
    %v531 = vshrl.u32 %v530, 7
    %v532 = vsub.s32 3, %v531
    %v533 = vrot.slane %v32, %v532
    %535 = vbcast.lane.b32.xlu0 %v533, 256
    %v536 = vpop.permute.xlu0 %535
    %s538 = sor.u32 256, 8
    %539 = vbcast.lane.b32.xlu0 %v533, %s538
    %v540 = vpop.permute.xlu0 %539
    %v541 = vlaneseq
    %v542 = vshrl.u32 %v541, 7
    %v543 = vsub.s32 4, %v542
    %v544 = vrot.slane %v32, %v543
    %546 = vbcast.lane.b32.xlu0 %v544, 256
    %v547 = vpop.permute.xlu0 %546
    %s549 = sor.u32 256, 8
    %550 = vbcast.lane.b32.xlu0 %v544, %s549
    %v551 = vpop.permute.xlu0 %550
    %v552 = vlaneseq
    %v553 = vshrl.u32 %v552, 7
    %v554 = vsub.s32 5, %v553
    %v555 = vrot.slane %v32, %v554
    %557 = vbcast.lane.b32.xlu0 %v555, 256
    %v558 = vpop.permute.xlu0 %557
    %s560 = sor.u32 256, 8
    %561 = vbcast.lane.b32.xlu0 %v555, %s560
    %v562 = vpop.permute.xlu0 %561
    %v563 = vlaneseq
    %v564 = vshrl.u32 %v563, 7
    %v565 = vsub.s32 6, %v564
    %v566 = vrot.slane %v32, %v565
    %568 = vbcast.lane.b32.xlu0 %v566, 256
    %v569 = vpop.permute.xlu0 %568
    %s571 = sor.u32 256, 8
    %572 = vbcast.lane.b32.xlu0 %v566, %s571
    %v573 = vpop.permute.xlu0 %572
    %v574 = vlaneseq
    %v575 = vshrl.u32 %v574, 7
    %v576 = vsub.s32 7, %v575
    %v577 = vrot.slane %v32, %v576
    %579 = vbcast.lane.b32.xlu0 %v577, 256
    %v580 = vpop.permute.xlu0 %579
    %s582 = sor.u32 256, 8
    %583 = vbcast.lane.b32.xlu0 %v577, %s582
    %v584 = vpop.permute.xlu0 %583
    %v585 = vlaneseq
    %v586 = vshrl.u32 %v585, 7
    %v587 = vsub.s32 0, %v586
    %v588 = vrot.slane %v33, %v587
    %590 = vbcast.lane.b32.xlu0 %v588, 256
    %v591 = vpop.permute.xlu0 %590
    %s593 = sor.u32 256, 8
    %594 = vbcast.lane.b32.xlu0 %v588, %s593
    %v595 = vpop.permute.xlu0 %594
    %v596 = vlaneseq
    %v597 = vshrl.u32 %v596, 7
    %v598 = vsub.s32 1, %v597
    %v599 = vrot.slane %v33, %v598
    %601 = vbcast.lane.b32.xlu0 %v599, 256
    %v602 = vpop.permute.xlu0 %601
    %s604 = sor.u32 256, 8
    %605 = vbcast.lane.b32.xlu0 %v599, %s604
    %v606 = vpop.permute.xlu0 %605
    %v607 = vlaneseq
    %v608 = vshrl.u32 %v607, 7
    %v609 = vsub.s32 2, %v608
    %v610 = vrot.slane %v33, %v609
    %612 = vbcast.lane.b32.xlu0 %v610, 256
    %v613 = vpop.permute.xlu0 %612
    %s615 = sor.u32 256, 8
    %616 = vbcast.lane.b32.xlu0 %v610, %s615
    %v617 = vpop.permute.xlu0 %616
    %v618 = vlaneseq
    %v619 = vshrl.u32 %v618, 7
    %v620 = vsub.s32 3, %v619
    %v621 = vrot.slane %v33, %v620
    %623 = vbcast.lane.b32.xlu0 %v621, 256
    %v624 = vpop.permute.xlu0 %623
    %s626 = sor.u32 256, 8
    %627 = vbcast.lane.b32.xlu0 %v621, %s626
    %v628 = vpop.permute.xlu0 %627
    %v629 = vlaneseq
    %v630 = vshrl.u32 %v629, 7
    %v631 = vsub.s32 4, %v630
    %v632 = vrot.slane %v33, %v631
    %634 = vbcast.lane.b32.xlu0 %v632, 256
    %v635 = vpop.permute.xlu0 %634
    %s637 = sor.u32 256, 8
    %638 = vbcast.lane.b32.xlu0 %v632, %s637
    %v639 = vpop.permute.xlu0 %638
    %v640 = vlaneseq
    %v641 = vshrl.u32 %v640, 7
    %v642 = vsub.s32 5, %v641
    %v643 = vrot.slane %v33, %v642
    %645 = vbcast.lane.b32.xlu0 %v643, 256
    %v646 = vpop.permute.xlu0 %645
    %s648 = sor.u32 256, 8
    %649 = vbcast.lane.b32.xlu0 %v643, %s648
    %v650 = vpop.permute.xlu0 %649
    %v651 = vlaneseq
    %v652 = vshrl.u32 %v651, 7
    %v653 = vsub.s32 6, %v652
    %v654 = vrot.slane %v33, %v653
    %656 = vbcast.lane.b32.xlu0 %v654, 256
    %v657 = vpop.permute.xlu0 %656
    %s659 = sor.u32 256, 8
    %660 = vbcast.lane.b32.xlu0 %v654, %s659
    %v661 = vpop.permute.xlu0 %660
    %v662 = vlaneseq
    %v663 = vshrl.u32 %v662, 7
    %v664 = vsub.s32 7, %v663
    %v665 = vrot.slane %v33, %v664
    %667 = vbcast.lane.b32.xlu0 %v665, 256
    %v668 = vpop.permute.xlu0 %667
    %s670 = sor.u32 256, 8
    %671 = vbcast.lane.b32.xlu0 %v665, %s670
    %v672 = vpop.permute.xlu0 %671
    %v677 = vcombine.high %v317, %v317
    %v679 = vunpack.c.l.s4 1966171168
    %v680 = vunpack.c.0.s8 %v679
    %v681 = vlaneseq
    %v682 = vshrl.u32 %v681, 7
    %v683 = vsub.s32 %v680, %v682
    %v684 = vrot.slane %v317, %v683
    %v686 = vunpack.c.l.s4 1966171168
    %v687 = vunpack.c.0.s8 %v686
    %v688 = vlaneseq
    %v689 = vshrl.u32 %v688, 7
    %v690 = vsub.s32 %v687, %v689
    %v691 = vrot.slane %v677, %v690
    %v692 = vcombine.high %v684, %v684
    %v693 = vcombine.high %v691, %v691
    %v695 = vunpack.c.l.s4 1966171168
    %v696 = vunpack.c.0.s8 %v695
    %v697 = vlaneseq
    %v698 = vshrl.u32 %v697, 7
    %v699 = vsub.s32 %v696, %v698
    %v700 = vrot.slane %v684, %v699
    %v702 = vunpack.c.l.s4 1966171168
    %v703 = vunpack.c.0.s8 %v702
    %v704 = vlaneseq
    %v705 = vshrl.u32 %v704, 7
    %v706 = vsub.s32 %v703, %v705
    %v707 = vrot.slane %v691, %v706
    %v709 = vunpack.c.l.s4 1966171168
    %v710 = vunpack.c.0.s8 %v709
    %v711 = vlaneseq
    %v712 = vshrl.u32 %v711, 7
    %v713 = vsub.s32 %v710, %v712
    %v714 = vrot.slane %v692, %v713
    %v716 = vunpack.c.l.s4 1966171168
    %v717 = vunpack.c.0.s8 %v716
    %v718 = vlaneseq
    %v719 = vshrl.u32 %v718, 7
    %v720 = vsub.s32 %v717, %v719
    %v721 = vrot.slane %v693, %v720
    %v722 = vcombine.high %v700, %v700
    %v723 = vcombine.high %v707, %v707
    %v724 = vcombine.high %v714, %v714
    %v725 = vcombine.high %v721, %v721
    %v726 = vcombine.high %v318, %v318
    %v728 = vunpack.c.l.s4 1966171168
    %v729 = vunpack.c.0.s8 %v728
    %v730 = vlaneseq
    %v731 = vshrl.u32 %v730, 7
    %v732 = vsub.s32 %v729, %v731
    %v733 = vrot.slane %v318, %v732
    %v735 = vunpack.c.l.s4 1966171168
    %v736 = vunpack.c.0.s8 %v735
    %v737 = vlaneseq
    %v738 = vshrl.u32 %v737, 7
    %v739 = vsub.s32 %v736, %v738
    %v740 = vrot.slane %v726, %v739
    %v741 = vcombine.high %v733, %v733
    %v742 = vcombine.high %v740, %v740
    %v744 = vunpack.c.l.s4 1966171168
    %v745 = vunpack.c.0.s8 %v744
    %v746 = vlaneseq
    %v747 = vshrl.u32 %v746, 7
    %v748 = vsub.s32 %v745, %v747
    %v749 = vrot.slane %v733, %v748
    %v751 = vunpack.c.l.s4 1966171168
    %v752 = vunpack.c.0.s8 %v751
    %v753 = vlaneseq
    %v754 = vshrl.u32 %v753, 7
    %v755 = vsub.s32 %v752, %v754
    %v756 = vrot.slane %v740, %v755
    %v758 = vunpack.c.l.s4 1966171168
    %v759 = vunpack.c.0.s8 %v758
    %v760 = vlaneseq
    %v761 = vshrl.u32 %v760, 7
    %v762 = vsub.s32 %v759, %v761
    %v763 = vrot.slane %v741, %v762
    %v765 = vunpack.c.l.s4 1966171168
    %v766 = vunpack.c.0.s8 %v765
    %v767 = vlaneseq
    %v768 = vshrl.u32 %v767, 7
    %v769 = vsub.s32 %v766, %v768
    %v770 = vrot.slane %v742, %v769
    %v771 = vcombine.high %v749, %v749
    %v772 = vcombine.high %v756, %v756
    %v773 = vcombine.high %v763, %v763
    %v774 = vcombine.high %v770, %v770
    %v775 = vcombine.high %v319, %v319
    %v777 = vunpack.c.l.s4 1966171168
    %v778 = vunpack.c.0.s8 %v777
    %v779 = vlaneseq
    %v780 = vshrl.u32 %v779, 7
    %v781 = vsub.s32 %v778, %v780
    %v782 = vrot.slane %v319, %v781
    %v784 = vunpack.c.l.s4 1966171168
    %v785 = vunpack.c.0.s8 %v784
    %v786 = vlaneseq
    %v787 = vshrl.u32 %v786, 7
    %v788 = vsub.s32 %v785, %v787
    %v789 = vrot.slane %v775, %v788
    %v790 = vcombine.high %v782, %v782
    %v791 = vcombine.high %v789, %v789
    %v793 = vunpack.c.l.s4 1966171168
    %v794 = vunpack.c.0.s8 %v793
    %v795 = vlaneseq
    %v796 = vshrl.u32 %v795, 7
    %v797 = vsub.s32 %v794, %v796
    %v798 = vrot.slane %v782, %v797
    %v800 = vunpack.c.l.s4 1966171168
    %v801 = vunpack.c.0.s8 %v800
    %v802 = vlaneseq
    %v803 = vshrl.u32 %v802, 7
    %v804 = vsub.s32 %v801, %v803
    %v805 = vrot.slane %v789, %v804
    %v807 = vunpack.c.l.s4 1966171168
    %v808 = vunpack.c.0.s8 %v807
    %v809 = vlaneseq
    %v810 = vshrl.u32 %v809, 7
    %v811 = vsub.s32 %v808, %v810
    %v812 = vrot.slane %v790, %v811
    %v814 = vunpack.c.l.s4 1966171168
    %v815 = vunpack.c.0.s8 %v814
    %v816 = vlaneseq
    %v817 = vshrl.u32 %v816, 7
    %v818 = vsub.s32 %v815, %v817
    %v819 = vrot.slane %v791, %v818
    %v820 = vcombine.high %v798, %v798
    %v821 = vcombine.high %v805, %v805
    %v822 = vcombine.high %v812, %v812
    %v823 = vcombine.high %v819, %v819
    %v824 = vcombine.high %v320, %v320
    %v826 = vunpack.c.l.s4 1966171168
    %v827 = vunpack.c.0.s8 %v826
    %v828 = vlaneseq
    %v829 = vshrl.u32 %v828, 7
    %v830 = vsub.s32 %v827, %v829
    %v831 = vrot.slane %v320, %v830
    %v833 = vunpack.c.l.s4 1966171168
    %v834 = vunpack.c.0.s8 %v833
    %v835 = vlaneseq
    %v836 = vshrl.u32 %v835, 7
    %v837 = vsub.s32 %v834, %v836
    %v838 = vrot.slane %v824, %v837
    %v839 = vcombine.high %v831, %v831
    %v840 = vcombine.high %v838, %v838
    %v842 = vunpack.c.l.s4 1966171168
    %v843 = vunpack.c.0.s8 %v842
    %v844 = vlaneseq
    %v845 = vshrl.u32 %v844, 7
    %v846 = vsub.s32 %v843, %v845
    %v847 = vrot.slane %v831, %v846
    %v849 = vunpack.c.l.s4 1966171168
    %v850 = vunpack.c.0.s8 %v849
    %v851 = vlaneseq
    %v852 = vshrl.u32 %v851, 7
    %v853 = vsub.s32 %v850, %v852
    %v854 = vrot.slane %v838, %v853
    %v856 = vunpack.c.l.s4 1966171168
    %v857 = vunpack.c.0.s8 %v856
    %v858 = vlaneseq
    %v859 = vshrl.u32 %v858, 7
    %v860 = vsub.s32 %v857, %v859
    %v861 = vrot.slane %v839, %v860
    %v863 = vunpack.c.l.s4 1966171168
    %v864 = vunpack.c.0.s8 %v863
    %v865 = vlaneseq
    %v866 = vshrl.u32 %v865, 7
    %v867 = vsub.s32 %v864, %v866
    %v868 = vrot.slane %v840, %v867
    %v869 = vcombine.high %v847, %v847
    %v870 = vcombine.high %v854, %v854
    %v871 = vcombine.high %v861, %v861
    %v872 = vcombine.high %v868, %v868
    %v873 = vlaneseq
    %v874 = vshrl.u32 %v873, 7
    %v875 = vsub.s32 0, %v874
    %v876 = vrot.slane %v700, %v875
    %v877 = vlaneseq
    %v878 = vshrl.u32 %v877, 7
    %v879 = vsub.s32 0, %v878
    %v880 = vrot.slane %v714, %v879
    %v881 = vlaneseq
    %v882 = vshrl.u32 %v881, 7
    %v883 = vsub.s32 0, %v882
    %v884 = vrot.slane %v722, %v883
    %v885 = vlaneseq
    %v886 = vshrl.u32 %v885, 7
    %v887 = vsub.s32 0, %v886
    %v888 = vrot.slane %v724, %v887
    %v889 = vlaneseq
    %v890 = vshrl.u32 %v889, 7
    %v891 = vsub.s32 0, %v890
    %v892 = vrot.slane %v707, %v891
    %v893 = vlaneseq
    %v894 = vshrl.u32 %v893, 7
    %v895 = vsub.s32 0, %v894
    %v896 = vrot.slane %v721, %v895
    %v897 = vlaneseq
    %v898 = vshrl.u32 %v897, 7
    %v899 = vsub.s32 0, %v898
    %v900 = vrot.slane %v723, %v899
    %v901 = vlaneseq
    %v902 = vshrl.u32 %v901, 7
    %v903 = vsub.s32 0, %v902
    %v904 = vrot.slane %v725, %v903
    %v905 = vlaneseq
    %v906 = vshrl.u32 %v905, 7
    %v907 = vsub.s32 0, %v906
    %v908 = vrot.slane %v749, %v907
    %v909 = vlaneseq
    %v910 = vshrl.u32 %v909, 7
    %v911 = vsub.s32 0, %v910
    %v912 = vrot.slane %v763, %v911
    %v913 = vlaneseq
    %v914 = vshrl.u32 %v913, 7
    %v915 = vsub.s32 0, %v914
    %v916 = vrot.slane %v771, %v915
    %v917 = vlaneseq
    %v918 = vshrl.u32 %v917, 7
    %v919 = vsub.s32 0, %v918
    %v920 = vrot.slane %v773, %v919
    %v921 = vlaneseq
    %v922 = vshrl.u32 %v921, 7
    %v923 = vsub.s32 0, %v922
    %v924 = vrot.slane %v756, %v923
    %v925 = vlaneseq
    %v926 = vshrl.u32 %v925, 7
    %v927 = vsub.s32 0, %v926
    %v928 = vrot.slane %v770, %v927
    %v929 = vlaneseq
    %v930 = vshrl.u32 %v929, 7
    %v931 = vsub.s32 0, %v930
    %v932 = vrot.slane %v772, %v931
    %v933 = vlaneseq
    %v934 = vshrl.u32 %v933, 7
    %v935 = vsub.s32 0, %v934
    %v936 = vrot.slane %v774, %v935
    %v937 = vlaneseq
    %v938 = vshrl.u32 %v937, 7
    %v939 = vsub.s32 0, %v938
    %v940 = vrot.slane %v798, %v939
    %v941 = vlaneseq
    %v942 = vshrl.u32 %v941, 7
    %v943 = vsub.s32 0, %v942
    %v944 = vrot.slane %v812, %v943
    %v945 = vlaneseq
    %v946 = vshrl.u32 %v945, 7
    %v947 = vsub.s32 0, %v946
    %v948 = vrot.slane %v820, %v947
    %v949 = vlaneseq
    %v950 = vshrl.u32 %v949, 7
    %v951 = vsub.s32 0, %v950
    %v952 = vrot.slane %v822, %v951
    %v953 = vlaneseq
    %v954 = vshrl.u32 %v953, 7
    %v955 = vsub.s32 0, %v954
    %v956 = vrot.slane %v805, %v955
    %v957 = vlaneseq
    %v958 = vshrl.u32 %v957, 7
    %v959 = vsub.s32 0, %v958
    %v960 = vrot.slane %v819, %v959
    %v961 = vlaneseq
    %v962 = vshrl.u32 %v961, 7
    %v963 = vsub.s32 0, %v962
    %v964 = vrot.slane %v821, %v963
    %v965 = vlaneseq
    %v966 = vshrl.u32 %v965, 7
    %v967 = vsub.s32 0, %v966
    %v968 = vrot.slane %v823, %v967
    %v969 = vlaneseq
    %v970 = vshrl.u32 %v969, 7
    %v971 = vsub.s32 0, %v970
    %v972 = vrot.slane %v847, %v971
    %v973 = vlaneseq
    %v974 = vshrl.u32 %v973, 7
    %v975 = vsub.s32 0, %v974
    %v976 = vrot.slane %v861, %v975
    %v977 = vlaneseq
    %v978 = vshrl.u32 %v977, 7
    %v979 = vsub.s32 0, %v978
    %v980 = vrot.slane %v869, %v979
    %v981 = vlaneseq
    %v982 = vshrl.u32 %v981, 7
    %v983 = vsub.s32 0, %v982
    %v984 = vrot.slane %v871, %v983
    %v985 = vlaneseq
    %v986 = vshrl.u32 %v985, 7
    %v987 = vsub.s32 0, %v986
    %v988 = vrot.slane %v854, %v987
    %v989 = vlaneseq
    %v990 = vshrl.u32 %v989, 7
    %v991 = vsub.s32 0, %v990
    %v992 = vrot.slane %v868, %v991
    %v993 = vlaneseq
    %v994 = vshrl.u32 %v993, 7
    %v995 = vsub.s32 0, %v994
    %v996 = vrot.slane %v870, %v995
    %v997 = vlaneseq
    %v998 = vshrl.u32 %v997, 7
    %v999 = vsub.s32 0, %v998
    %v1000 = vrot.slane %v872, %v999
    %v1033 = vmul.f32 %v327, %v876
    %v1034 = vmul.f32 %v331, %v876
    %v1035 = vmul.f32 %v338, %v880
    %v1036 = vmul.f32 %v342, %v880
    %v1037 = vmul.f32 %v349, %v884
    %v1038 = vmul.f32 %v353, %v884
    %v1039 = vmul.f32 %v360, %v888
    %v1040 = vmul.f32 %v364, %v888
    %v1041 = vmul.f32 %v371, %v892
    %v1042 = vmul.f32 %v375, %v892
    %v1043 = vmul.f32 %v382, %v896
    %v1044 = vmul.f32 %v386, %v896
    %v1045 = vmul.f32 %v393, %v900
    %v1046 = vmul.f32 %v397, %v900
    %v1047 = vmul.f32 %v404, %v904
    %v1048 = vmul.f32 %v408, %v904
    %v1049 = vmul.f32 %v415, %v908
    %v1050 = vmul.f32 %v419, %v908
    %v1051 = vmul.f32 %v426, %v912
    %v1052 = vmul.f32 %v430, %v912
    %v1053 = vmul.f32 %v437, %v916
    %v1054 = vmul.f32 %v441, %v916
    %v1055 = vmul.f32 %v448, %v920
    %v1056 = vmul.f32 %v452, %v920
    %v1057 = vmul.f32 %v459, %v924
    %v1058 = vmul.f32 %v463, %v924
    %v1059 = vmul.f32 %v470, %v928
    %v1060 = vmul.f32 %v474, %v928
    %v1061 = vmul.f32 %v481, %v932
    %v1062 = vmul.f32 %v485, %v932
    %v1063 = vmul.f32 %v492, %v936
    %v1064 = vmul.f32 %v496, %v936
    %v1065 = vmul.f32 %v503, %v940
    %v1066 = vmul.f32 %v507, %v940
    %v1067 = vmul.f32 %v514, %v944
    %v1068 = vmul.f32 %v518, %v944
    %v1069 = vmul.f32 %v525, %v948
    %v1070 = vmul.f32 %v529, %v948
    %v1071 = vmul.f32 %v536, %v952
    %v1072 = vmul.f32 %v540, %v952
    %v1073 = vmul.f32 %v547, %v956
    %v1074 = vmul.f32 %v551, %v956
    %v1075 = vmul.f32 %v558, %v960
    %v1076 = vmul.f32 %v562, %v960
    %v1077 = vmul.f32 %v569, %v964
    %v1078 = vmul.f32 %v573, %v964
    %v1079 = vmul.f32 %v580, %v968
    %v1080 = vmul.f32 %v584, %v968
    %v1081 = vmul.f32 %v591, %v972
    %v1082 = vmul.f32 %v595, %v972
    %v1083 = vmul.f32 %v602, %v976
    %v1084 = vmul.f32 %v606, %v976
    %v1085 = vmul.f32 %v613, %v980
    %v1086 = vmul.f32 %v617, %v980
    %v1087 = vmul.f32 %v624, %v984
    %v1088 = vmul.f32 %v628, %v984
    %v1089 = vmul.f32 %v635, %v988
    %v1090 = vmul.f32 %v639, %v988
    %v1091 = vmul.f32 %v646, %v992
    %v1092 = vmul.f32 %v650, %v992
    %v1093 = vmul.f32 %v657, %v996
    %v1094 = vmul.f32 %v661, %v996
    %v1095 = vmul.f32 %v668, %v1000
    %v1096 = vmul.f32 %v672, %v1000
    %v1097 = vsel %vm219, %v1033, -inf
    %v1098 = vsel %vm219, %v1035, -inf
    %v1099 = vsel %vm219, %v1037, -inf
    %v1100 = vmax.f32 %v1097, %v1099
    %v1101 = vsel %vm219, %v1039, -inf
    %v1102 = vmax.f32 %v1098, %v1101
    %v1103 = vsel %vm219, %v1041, -inf
    %v1104 = vmax.f32 %v1100, %v1103
    %v1105 = vsel %vm219, %v1043, -inf
    %v1106 = vmax.f32 %v1102, %v1105
    %v1107 = vsel %vm219, %v1045, -inf
    %v1108 = vmax.f32 %v1104, %v1107
    %v1109 = vsel %vm219, %v1047, -inf
    %v1110 = vmax.f32 %v1106, %v1109
    %v1111 = vsel %vm219, %v1049, -inf
    %v1112 = vmax.f32 %v1108, %v1111
    %v1113 = vsel %vm219, %v1051, -inf
    %v1114 = vmax.f32 %v1110, %v1113
    %v1115 = vsel %vm219, %v1053, -inf
    %v1116 = vmax.f32 %v1112, %v1115
    %v1117 = vsel %vm219, %v1055, -inf
    %v1118 = vmax.f32 %v1114, %v1117
    %v1119 = vsel %vm219, %v1057, -inf
    %v1120 = vmax.f32 %v1116, %v1119
    %v1121 = vsel %vm219, %v1059, -inf
    %v1122 = vmax.f32 %v1118, %v1121
    %v1123 = vsel %vm219, %v1061, -inf
    %v1124 = vmax.f32 %v1120, %v1123
    %v1125 = vsel %vm219, %v1063, -inf
    %v1126 = vmax.f32 %v1122, %v1125
    %v1127 = vsel %vm219, %v1065, -inf
    %v1128 = vmax.f32 %v1124, %v1127
    %v1129 = vsel %vm219, %v1067, -inf
    %v1130 = vmax.f32 %v1126, %v1129
    %v1131 = vsel %vm219, %v1069, -inf
    %v1132 = vmax.f32 %v1128, %v1131
    %v1133 = vsel %vm219, %v1071, -inf
    %v1134 = vmax.f32 %v1130, %v1133
    %v1135 = vsel %vm219, %v1073, -inf
    %v1136 = vmax.f32 %v1132, %v1135
    %v1137 = vsel %vm219, %v1075, -inf
    %v1138 = vmax.f32 %v1134, %v1137
    %v1139 = vsel %vm219, %v1077, -inf
    %v1140 = vmax.f32 %v1136, %v1139
    %v1141 = vsel %vm219, %v1079, -inf
    %v1142 = vmax.f32 %v1138, %v1141
    %v1143 = vsel %vm219, %v1081, -inf
    %v1144 = vmax.f32 %v1140, %v1143
    %v1145 = vsel %vm219, %v1083, -inf
    %v1146 = vmax.f32 %v1142, %v1145
    %v1147 = vsel %vm219, %v1085, -inf
    %v1148 = vmax.f32 %v1144, %v1147
    %v1149 = vsel %vm219, %v1087, -inf
    %v1150 = vmax.f32 %v1146, %v1149
    %v1151 = vsel %vm219, %v1089, -inf
    %v1152 = vmax.f32 %v1148, %v1151
    %v1153 = vsel %vm219, %v1091, -inf
    %v1154 = vmax.f32 %v1150, %v1153
    %v1155 = vsel %vm219, %v1093, -inf
    %v1156 = vmax.f32 %v1152, %v1155
    %v1157 = vsel %vm219, %v1095, -inf
    %v1158 = vmax.f32 %v1154, %v1157
    %v1159 = vmax.f32 %v1156, %v1158
    %v1160 = vsel %vm219, %v1034, -inf
    %v1161 = vsel %vm219, %v1036, -inf
    %v1162 = vsel %vm219, %v1038, -inf
    %v1163 = vmax.f32 %v1160, %v1162
    %v1164 = vsel %vm219, %v1040, -inf
    %v1165 = vmax.f32 %v1161, %v1164
    %v1166 = vsel %vm219, %v1042, -inf
    %v1167 = vmax.f32 %v1163, %v1166
    %v1168 = vsel %vm219, %v1044, -inf
    %v1169 = vmax.f32 %v1165, %v1168
    %v1170 = vsel %vm219, %v1046, -inf
    %v1171 = vmax.f32 %v1167, %v1170
    %v1172 = vsel %vm219, %v1048, -inf
    %v1173 = vmax.f32 %v1169, %v1172
    %v1174 = vsel %vm219, %v1050, -inf
    %v1175 = vmax.f32 %v1171, %v1174
    %v1176 = vsel %vm219, %v1052, -inf
    %v1177 = vmax.f32 %v1173, %v1176
    %v1178 = vsel %vm219, %v1054, -inf
    %v1179 = vmax.f32 %v1175, %v1178
    %v1180 = vsel %vm219, %v1056, -inf
    %v1181 = vmax.f32 %v1177, %v1180
    %v1182 = vsel %vm219, %v1058, -inf
    %v1183 = vmax.f32 %v1179, %v1182
    %v1184 = vsel %vm219, %v1060, -inf
    %v1185 = vmax.f32 %v1181, %v1184
    %v1186 = vsel %vm219, %v1062, -inf
    %v1187 = vmax.f32 %v1183, %v1186
    %v1188 = vsel %vm219, %v1064, -inf
    %v1189 = vmax.f32 %v1185, %v1188
    %v1190 = vsel %vm219, %v1066, -inf
    %v1191 = vmax.f32 %v1187, %v1190
    %v1192 = vsel %vm219, %v1068, -inf
    %v1193 = vmax.f32 %v1189, %v1192
    %v1194 = vsel %vm219, %v1070, -inf
    %v1195 = vmax.f32 %v1191, %v1194
    %v1196 = vsel %vm219, %v1072, -inf
    %v1197 = vmax.f32 %v1193, %v1196
    %v1198 = vsel %vm219, %v1074, -inf
    %v1199 = vmax.f32 %v1195, %v1198
    %v1200 = vsel %vm219, %v1076, -inf
    %v1201 = vmax.f32 %v1197, %v1200
    %v1202 = vsel %vm219, %v1078, -inf
    %v1203 = vmax.f32 %v1199, %v1202
    %v1204 = vsel %vm219, %v1080, -inf
    %v1205 = vmax.f32 %v1201, %v1204
    %v1206 = vsel %vm219, %v1082, -inf
    %v1207 = vmax.f32 %v1203, %v1206
    %v1208 = vsel %vm219, %v1084, -inf
    %v1209 = vmax.f32 %v1205, %v1208
    %v1210 = vsel %vm219, %v1086, -inf
    %v1211 = vmax.f32 %v1207, %v1210
    %v1212 = vsel %vm219, %v1088, -inf
    %v1213 = vmax.f32 %v1209, %v1212
    %v1214 = vsel %vm219, %v1090, -inf
    %v1215 = vmax.f32 %v1211, %v1214
    %v1216 = vsel %vm219, %v1092, -inf
    %v1217 = vmax.f32 %v1213, %v1216
    %v1218 = vsel %vm219, %v1094, -inf
    %v1219 = vmax.f32 %v1215, %v1218
    %v1220 = vsel %vm219, %v1096, -inf
    %v1221 = vmax.f32 %v1217, %v1220
    %v1222 = vmax.f32 %v1219, %v1221
    %v1223 = vsel %vm219, %v1159, 0.0
    %v1224 = vsel %vm219, %v1222, 0.0
    %v1225 = vadd.f32 %v1223, %v1224
    %v1226 = vrot.slane %v1225, 4
    %v1227 = vadd.f32 %v1225, %v1226
    %v1228 = vrot.slane %v1227, 2
    %v1229 = vadd.f32 %v1227, %v1228
    %v1230 = vrot.slane %v1229, 1
    %v1231 = vadd.f32 %v1229, %v1230
    %v1232 = vrcp.pop 16.0
    %v1233 = vmul.f32 %v1231, %v1232
    %v1234 = vmul.f32 %v1159, %v1159
    %v1235 = vmul.f32 %v1222, %v1222
    %v1236 = vsel %vm219, %v1234, 0.0
    %v1237 = vsel %vm219, %v1235, 0.0
    %v1238 = vadd.f32 %v1236, %v1237
    %v1239 = vrot.slane %v1238, 4
    %v1240 = vadd.f32 %v1238, %v1239
    %v1241 = vrot.slane %v1240, 2
    %v1242 = vadd.f32 %v1240, %v1241
    %v1243 = vrot.slane %v1242, 1
    %v1244 = vadd.f32 %v1242, %v1243
    %v1245 = vmul.f32 %v1244, %v1232
    %v1246 = vmul.f32 %v1233, %v1233
    %v1247 = vsub.f32 %v1245, %v1246
    %v1248 = vmax.f32 %v1247, 0.0
    %v1249 = vsub.f32 %v1159, %v1233
    %v1250 = vsub.f32 %v1222, %v1233
    %v1251 = vadd.f32 %v1248, 1e-05
    %v1252 = vrsqrt.pop %v1251
    %v1253 = vmul.f32 %v1249, %v1252
    %v1254 = vmul.f32 %v1250, %v1252
    %v1255 = vlaneseq
    %v1256 = vshrl.u32 %v1255, 7
    %v1257 = vsub.s32 1, %v1256
    %v1258 = vrot.slane %v34, %v1257
    %v1259 = vmul.f32 %v1253, %v1258
    %v1260 = vmul.f32 %v1254, %v1258
    %v1261 = vlaneseq
    %v1262 = vshrl.u32 %v1261, 7
    %v1263 = vsub.s32 2, %v1262
    %v1264 = vrot.slane %v34, %v1263
    %v1265 = vadd.f32 %v1259, %v1264
    %v1266 = vadd.f32 %v1260, %v1264
    %v1267 = vmax.f32 %v1265, 0.0
    %v1268 = vmax.f32 %v1266, 0.0
    %v1270 = vsel %vm219, %v1267, 0
    %v1273 = vsel %vm219, %v1268, 0
    %1275 = vmatprep.subr.mxu0 0.0
    %1276 = vmatpush1.msra.mxu0 %v42
    %1277 = vmatprep.subr.mxu0 0.0
    %1278 = vmatpush1.msra.mxu0 %v43
    %1279 = vmatprep.subr.mxu0 0.0
    %1280 = vmatpush1.msra.mxu0 %v44
    %1281 = vmatprep.subr.mxu0 0.0
    %1282 = vmatpush1.msra.mxu0 %v45
    %1283 = vmatprep.subr.mxu0 0.0
    %1284 = vmatpush1.msra.mxu0 0.0
    %1285 = vmatprep.subr.mxu0 0.0
    %1286 = vmatpush1.msra.mxu0 0.0
    %1287 = vmatprep.subr.mxu0 0.0
    %1288 = vmatpush1.msra.mxu0 0.0
    %1289 = vmatprep.subr.mxu0 0.0
    %1290 = vmatpush1.msra.mxu0 0.0
    %1291 = vmatprep.subr.mxu0 0.0
    %1292 = vmatpush1.msra.mxu0 0.0
    %1293 = vmatprep.subr.mxu0 0.0
    %1294 = vmatpush1.msra.mxu0 0.0
    %1295 = vmatprep.subr.mxu0 0.0
    %1296 = vmatpush1.msra.mxu0 0.0
    %1297 = vmatprep.subr.mxu0 0.0
    %1298 = vmatpush1.msra.mxu0 0.0
    %1299 = vmatprep.subr.mxu0 0.0
    %1300 = vmatpush1.msra.mxu0 0.0
    %1301 = vmatprep.subr.mxu0 0.0
    %1302 = vmatpush1.msra.mxu0 0.0
    %1303 = vmatprep.subr.mxu0 0.0
    %1304 = vmatpush1.msra.mxu0 0.0
    %1305 = vmatprep.subr.mxu0 0.0
    %1306 = vmatpush1.msra.mxu0 0.0
    %1307 = vmatprep.subr.mxu0 0.0
    %1308 = vmatpush1.msra.mxu0 0.0
    %1309 = vmatprep.subr.mxu0 0.0
    %1310 = vmatpush1.msra.mxu0 0.0
    %1311 = vmatprep.subr.mxu0 0.0
    %1312 = vmatpush1.msra.mxu0 0.0
    %1313 = vmatprep.subr.mxu0 0.0
    %1314 = vmatpush1.msra.mxu0 0.0
    %1315 = vmatprep.subr.mxu0 0.0
    %1316 = vmatpush1.msra.mxu0 0.0
    %1317 = vmatprep.subr.mxu0 0.0
    %1318 = vmatpush1.msra.mxu0 0.0
    %1319 = vmatprep.subr.mxu0 0.0
    %1320 = vmatpush1.msra.mxu0 0.0
    %1321 = vmatprep.subr.mxu0 0.0
    %1322 = vmatpush1.msra.mxu0 0.0
    %1323 = vmatprep.subr.mxu0 0.0
    %1324 = vmatpush1.msra.mxu0 0.0
    %1325 = vmatprep.subr.mxu0 0.0
    %1326 = vmatpush1.msra.mxu0 0.0
    %1327 = vmatprep.subr.mxu0 0.0
    %1328 = vmatpush1.msra.mxu0 0.0
    %1329 = vmatprep.subr.mxu0 0.0
    %1330 = vmatpush1.msra.mxu0 0.0
    %1331 = vmatprep.subr.mxu0 0.0
    %1332 = vmatpush1.msra.mxu0 0.0
    %1333 = vmatprep.subr.mxu0 0.0
    %1334 = vmatpush1.msra.mxu0 0.0
    %1335 = vmatprep.subr.mxu0 0.0
    %1336 = vmatpush1.msra.mxu0 0.0
    %1337 = vmatprep.subr.mxu0 0.0
    %1338 = vmatpush1.msra.mxu0 0.0
    %1339 = vmatprep.mubr.f32.mxu0 0.0
    %1340 = vmatmul.mubr.f32.gmra.mrb[0].mxu0 %v1270
    %v1341 = vpop.f32.mrb[0].mxu0
    %v1342 = vadd.f32 0.0, %v1341
    %v1343 = vpop.f32.mrb[0].mxu0
    %1344 = vmatprep.mubr.f32.mxu0 0.0
    %1345 = vmatmul.mubr.f32.gmra.mrb[0].mxu0 %v1273
    %v1346 = vpop.f32.mrb[0].mxu0
    %v1347 = vadd.f32 0.0, %v1346
    %v1348 = vpop.f32.mrb[0].mxu0
    %1349 = vdwg.mxu0
    %1350 = vmatprep.subr.mxu0 0.0
    %1351 = vmatpush1.msra.mxu0 %v46
    %1352 = vmatprep.subr.mxu0 0.0
    %1353 = vmatpush1.msra.mxu0 %v47
    %1354 = vmatprep.subr.mxu0 0.0
    %1355 = vmatpush1.msra.mxu0 %v48
    %1356 = vmatprep.subr.mxu0 0.0
    %1357 = vmatpush1.msra.mxu0 %v49
    %1358 = vmatprep.subr.mxu0 0.0
    %1359 = vmatpush1.msra.mxu0 0.0
    %1360 = vmatprep.subr.mxu0 0.0
    %1361 = vmatpush1.msra.mxu0 0.0
    %1362 = vmatprep.subr.mxu0 0.0
    %1363 = vmatpush1.msra.mxu0 0.0
    %1364 = vmatprep.subr.mxu0 0.0
    %1365 = vmatpush1.msra.mxu0 0.0
    %1366 = vmatprep.subr.mxu0 0.0
    %1367 = vmatpush1.msra.mxu0 0.0
    %1368 = vmatprep.subr.mxu0 0.0
    %1369 = vmatpush1.msra.mxu0 0.0
    %1370 = vmatprep.subr.mxu0 0.0
    %1371 = vmatpush1.msra.mxu0 0.0
    %1372 = vmatprep.subr.mxu0 0.0
    %1373 = vmatpush1.msra.mxu0 0.0
    %1374 = vmatprep.subr.mxu0 0.0
    %1375 = vmatpush1.msra.mxu0 0.0
    %1376 = vmatprep.subr.mxu0 0.0
    %1377 = vmatpush1.msra.mxu0 0.0
    %1378 = vmatprep.subr.mxu0 0.0
    %1379 = vmatpush1.msra.mxu0 0.0
    %1380 = vmatprep.subr.mxu0 0.0
    %1381 = vmatpush1.msra.mxu0 0.0
    %1382 = vmatprep.subr.mxu0 0.0
    %1383 = vmatpush1.msra.mxu0 0.0
    %1384 = vmatprep.subr.mxu0 0.0
    %1385 = vmatpush1.msra.mxu0 0.0
    %1386 = vmatprep.subr.mxu0 0.0
    %1387 = vmatpush1.msra.mxu0 0.0
    %1388 = vmatprep.subr.mxu0 0.0
    %1389 = vmatpush1.msra.mxu0 0.0
    %1390 = vmatprep.subr.mxu0 0.0
    %1391 = vmatpush1.msra.mxu0 0.0
    %1392 = vmatprep.subr.mxu0 0.0
    %1393 = vmatpush1.msra.mxu0 0.0
    %1394 = vmatprep.subr.mxu0 0.0
    %1395 = vmatpush1.msra.mxu0 0.0
    %1396 = vmatprep.subr.mxu0 0.0
    %1397 = vmatpush1.msra.mxu0 0.0
    %1398 = vmatprep.subr.mxu0 0.0
    %1399 = vmatpush1.msra.mxu0 0.0
    %1400 = vmatprep.subr.mxu0 0.0
    %1401 = vmatpush1.msra.mxu0 0.0
    %1402 = vmatprep.subr.mxu0 0.0
    %1403 = vmatpush1.msra.mxu0 0.0
    %1404 = vmatprep.subr.mxu0 0.0
    %1405 = vmatpush1.msra.mxu0 0.0
    %1406 = vmatprep.subr.mxu0 0.0
    %1407 = vmatpush1.msra.mxu0 0.0
    %1408 = vmatprep.subr.mxu0 0.0
    %1409 = vmatpush1.msra.mxu0 0.0
    %1410 = vmatprep.subr.mxu0 0.0
    %1411 = vmatpush1.msra.mxu0 0.0
    %1412 = vmatprep.subr.mxu0 0.0
    %1413 = vmatpush1.msra.mxu0 0.0
    %1414 = vmatprep.mubr.f32.mxu0 0.0
    %1415 = vmatmul.mubr.f32.gmra.mrb[0].mxu0 %v1270
    %v1416 = vpop.f32.mrb[0].mxu0
    %v1417 = vadd.f32 0.0, %v1416
    %v1418 = vpop.f32.mrb[0].mxu0
    %1419 = vmatprep.mubr.f32.mxu0 0.0
    %1420 = vmatmul.mubr.f32.gmra.mrb[0].mxu0 %v1273
    %v1421 = vpop.f32.mrb[0].mxu0
    %v1422 = vadd.f32 0.0, %v1421
    %v1423 = vpop.f32.mrb[0].mxu0
    %1424 = vdwg.mxu0
    %v1425 = vlaneseq
    %v1426 = vshrl.u32 %v1425, 7
    %v1427 = vsub.s32 3, %v1426
    %v1428 = vrot.slane %v34, %v1427
    %1429 = vmatprep.subr.mxu0 0.0
    %1430 = vmatpush1.msra.mxu0 %v1342
    %1431 = vmatprep.subr.mxu0 0.0
    %1432 = vmatpush1.msra.mxu0 %v1347
    %1433 = vmatprep.subr.mxu0 0.0
    %1434 = vmatpush1.msra.mxu0 %v1417
    %1435 = vmatprep.subr.mxu0 0.0
    %1436 = vmatpush1.msra.mxu0 %v1422
    %1437 = vmatprep.subr.mxu0 0.0
    %1438 = vmatpush1.msra.mxu0 0.0
    %1439 = vmatprep.subr.mxu0 0.0
    %1440 = vmatpush1.msra.mxu0 0.0
    %1441 = vmatprep.subr.mxu0 0.0
    %1442 = vmatpush1.msra.mxu0 0.0
    %1443 = vmatprep.subr.mxu0 0.0
    %1444 = vmatpush1.msra.mxu0 0.0
    %1445 = vmatprep.subr.mxu0 0.0
    %1446 = vmatpush1.msra.mxu0 0.0
    %1447 = vmatprep.subr.mxu0 0.0
    %1448 = vmatpush1.msra.mxu0 0.0
    %1449 = vmatprep.subr.mxu0 0.0
    %1450 = vmatpush1.msra.mxu0 0.0
    %1451 = vmatprep.subr.mxu0 0.0
    %1452 = vmatpush1.msra.mxu0 0.0
    %1453 = vmatprep.subr.mxu0 0.0
    %1454 = vmatpush1.msra.mxu0 0.0
    %1455 = vmatprep.subr.mxu0 0.0
    %1456 = vmatpush1.msra.mxu0 0.0
    %1457 = vmatprep.subr.mxu0 0.0
    %1458 = vmatpush1.msra.mxu0 0.0
    %1459 = vmatprep.subr.mxu0 0.0
    %1460 = vmatpush1.msra.mxu0 0.0
    %1461 = vmatprep.subr.mxu0 0.0
    %1462 = vmatpush1.msra.mxu0 0.0
    %1463 = vmatprep.subr.mxu0 0.0
    %1464 = vmatpush1.msra.mxu0 0.0
    %1465 = vmatprep.subr.mxu0 0.0
    %1466 = vmatpush1.msra.mxu0 0.0
    %1467 = vmatprep.subr.mxu0 0.0
    %1468 = vmatpush1.msra.mxu0 0.0
    %1469 = vmatprep.subr.mxu0 0.0
    %1470 = vmatpush1.msra.mxu0 0.0
    %1471 = vmatprep.subr.mxu0 0.0
    %1472 = vmatpush1.msra.mxu0 0.0
    %1473 = vmatprep.subr.mxu0 0.0
    %1474 = vmatpush1.msra.mxu0 0.0
    %1475 = vmatprep.subr.mxu0 0.0
    %1476 = vmatpush1.msra.mxu0 0.0
    %1477 = vmatprep.subr.mxu0 0.0
    %1478 = vmatpush1.msra.mxu0 0.0
    %1479 = vmatprep.subr.mxu0 0.0
    %1480 = vmatpush1.msra.mxu0 0.0
    %1481 = vmatprep.subr.mxu0 0.0
    %1482 = vmatpush1.msra.mxu0 0.0
    %1483 = vmatprep.subr.mxu0 0.0
    %1484 = vmatpush1.msra.mxu0 0.0
    %1485 = vmatprep.subr.mxu0 0.0
    %1486 = vmatpush1.msra.mxu0 0.0
    %1487 = vmatprep.subr.mxu0 0.0
    %1488 = vmatpush1.msra.mxu0 0.0
    %1489 = vmatprep.subr.mxu0 0.0
    %1490 = vmatpush1.msra.mxu0 0.0
    %1491 = vmatprep.subr.mxu0 0.0
    %1492 = vmatpush1.msra.mxu0 0.0
    %1493 = vmatprep.mubr.f32.mxu0 0.0
    %1494 = vmatmul.mubr.f32.gmra.mrb[0].mxu0 %v221
    %v1495 = vpop.f32.mrb[0].mxu0
    %v1496 = vadd.f32 %v1428, %v1495
    %v1497 = vpop.f32.mrb[0].mxu0
    %1498 = vmatprep.mubr.f32.mxu0 0.0
    %1499 = vmatmul.mubr.f32.gmra.mrb[0].mxu0 %v224
    %v1500 = vpop.f32.mrb[0].mxu0
    %v1501 = vadd.f32 %v1428, %v1500
    %v1502 = vpop.f32.mrb[0].mxu0
    %1503 = vmatprep.mubr.f32.mxu0 0.0
    %1504 = vmatmul.mubr.f32.gmra.mrb[0].mxu0 %v227
    %v1505 = vpop.f32.mrb[0].mxu0
    %v1506 = vadd.f32 %v1428, %v1505
    %v1507 = vpop.f32.mrb[0].mxu0
    %1508 = vmatprep.mubr.f32.mxu0 0.0
    %1509 = vmatmul.mubr.f32.gmra.mrb[0].mxu0 %v230
    %v1510 = vpop.f32.mrb[0].mxu0
    %v1511 = vadd.f32 %v1428, %v1510
    %v1512 = vpop.f32.mrb[0].mxu0
    %1513 = vdwg.mxu0
    %v1514 = vmax.f32 %v1496, 0.0
    %v1515 = vmax.f32 %v1501, 0.0
    %v1516 = vmax.f32 %v1506, 0.0
    %v1517 = vmax.f32 %v1511, 0.0
    %v1522 = vcombine.high %v1514, %v1514
    %v1524 = vunpack.c.l.s4 1966171168
    %v1525 = vunpack.c.0.s8 %v1524
    %v1526 = vlaneseq
    %v1527 = vshrl.u32 %v1526, 7
    %v1528 = vsub.s32 %v1525, %v1527
    %v1529 = vrot.slane %v1514, %v1528
    %v1531 = vunpack.c.l.s4 1966171168
    %v1532 = vunpack.c.0.s8 %v1531
    %v1533 = vlaneseq
    %v1534 = vshrl.u32 %v1533, 7
    %v1535 = vsub.s32 %v1532, %v1534
    %v1536 = vrot.slane %v1522, %v1535
    %v1537 = vcombine.high %v1529, %v1529
    %v1538 = vcombine.high %v1536, %v1536
    %v1540 = vunpack.c.l.s4 1966171168
    %v1541 = vunpack.c.0.s8 %v1540
    %v1542 = vlaneseq
    %v1543 = vshrl.u32 %v1542, 7
    %v1544 = vsub.s32 %v1541, %v1543
    %v1545 = vrot.slane %v1529, %v1544
    %v1547 = vunpack.c.l.s4 1966171168
    %v1548 = vunpack.c.0.s8 %v1547
    %v1549 = vlaneseq
    %v1550 = vshrl.u32 %v1549, 7
    %v1551 = vsub.s32 %v1548, %v1550
    %v1552 = vrot.slane %v1536, %v1551
    %v1554 = vunpack.c.l.s4 1966171168
    %v1555 = vunpack.c.0.s8 %v1554
    %v1556 = vlaneseq
    %v1557 = vshrl.u32 %v1556, 7
    %v1558 = vsub.s32 %v1555, %v1557
    %v1559 = vrot.slane %v1537, %v1558
    %v1561 = vunpack.c.l.s4 1966171168
    %v1562 = vunpack.c.0.s8 %v1561
    %v1563 = vlaneseq
    %v1564 = vshrl.u32 %v1563, 7
    %v1565 = vsub.s32 %v1562, %v1564
    %v1566 = vrot.slane %v1538, %v1565
    %v1567 = vcombine.high %v1545, %v1545
    %v1568 = vcombine.high %v1552, %v1552
    %v1569 = vcombine.high %v1559, %v1559
    %v1570 = vcombine.high %v1566, %v1566
    %v1571 = vcombine.high %v1515, %v1515
    %v1573 = vunpack.c.l.s4 1966171168
    %v1574 = vunpack.c.0.s8 %v1573
    %v1575 = vlaneseq
    %v1576 = vshrl.u32 %v1575, 7
    %v1577 = vsub.s32 %v1574, %v1576
    %v1578 = vrot.slane %v1515, %v1577
    %v1580 = vunpack.c.l.s4 1966171168
    %v1581 = vunpack.c.0.s8 %v1580
    %v1582 = vlaneseq
    %v1583 = vshrl.u32 %v1582, 7
    %v1584 = vsub.s32 %v1581, %v1583
    %v1585 = vrot.slane %v1571, %v1584
    %v1586 = vcombine.high %v1578, %v1578
    %v1587 = vcombine.high %v1585, %v1585
    %v1589 = vunpack.c.l.s4 1966171168
    %v1590 = vunpack.c.0.s8 %v1589
    %v1591 = vlaneseq
    %v1592 = vshrl.u32 %v1591, 7
    %v1593 = vsub.s32 %v1590, %v1592
    %v1594 = vrot.slane %v1578, %v1593
    %v1596 = vunpack.c.l.s4 1966171168
    %v1597 = vunpack.c.0.s8 %v1596
    %v1598 = vlaneseq
    %v1599 = vshrl.u32 %v1598, 7
    %v1600 = vsub.s32 %v1597, %v1599
    %v1601 = vrot.slane %v1585, %v1600
    %v1603 = vunpack.c.l.s4 1966171168
    %v1604 = vunpack.c.0.s8 %v1603
    %v1605 = vlaneseq
    %v1606 = vshrl.u32 %v1605, 7
    %v1607 = vsub.s32 %v1604, %v1606
    %v1608 = vrot.slane %v1586, %v1607
    %v1610 = vunpack.c.l.s4 1966171168
    %v1611 = vunpack.c.0.s8 %v1610
    %v1612 = vlaneseq
    %v1613 = vshrl.u32 %v1612, 7
    %v1614 = vsub.s32 %v1611, %v1613
    %v1615 = vrot.slane %v1587, %v1614
    %v1616 = vcombine.high %v1594, %v1594
    %v1617 = vcombine.high %v1601, %v1601
    %v1618 = vcombine.high %v1608, %v1608
    %v1619 = vcombine.high %v1615, %v1615
    %v1620 = vcombine.high %v1516, %v1516
    %v1622 = vunpack.c.l.s4 1966171168
    %v1623 = vunpack.c.0.s8 %v1622
    %v1624 = vlaneseq
    %v1625 = vshrl.u32 %v1624, 7
    %v1626 = vsub.s32 %v1623, %v1625
    %v1627 = vrot.slane %v1516, %v1626
    %v1629 = vunpack.c.l.s4 1966171168
    %v1630 = vunpack.c.0.s8 %v1629
    %v1631 = vlaneseq
    %v1632 = vshrl.u32 %v1631, 7
    %v1633 = vsub.s32 %v1630, %v1632
    %v1634 = vrot.slane %v1620, %v1633
    %v1635 = vcombine.high %v1627, %v1627
    %v1636 = vcombine.high %v1634, %v1634
    %v1638 = vunpack.c.l.s4 1966171168
    %v1639 = vunpack.c.0.s8 %v1638
    %v1640 = vlaneseq
    %v1641 = vshrl.u32 %v1640, 7
    %v1642 = vsub.s32 %v1639, %v1641
    %v1643 = vrot.slane %v1627, %v1642
    %v1645 = vunpack.c.l.s4 1966171168
    %v1646 = vunpack.c.0.s8 %v1645
    %v1647 = vlaneseq
    %v1648 = vshrl.u32 %v1647, 7
    %v1649 = vsub.s32 %v1646, %v1648
    %v1650 = vrot.slane %v1634, %v1649
    %v1652 = vunpack.c.l.s4 1966171168
    %v1653 = vunpack.c.0.s8 %v1652
    %v1654 = vlaneseq
    %v1655 = vshrl.u32 %v1654, 7
    %v1656 = vsub.s32 %v1653, %v1655
    %v1657 = vrot.slane %v1635, %v1656
    %v1659 = vunpack.c.l.s4 1966171168
    %v1660 = vunpack.c.0.s8 %v1659
    %v1661 = vlaneseq
    %v1662 = vshrl.u32 %v1661, 7
    %v1663 = vsub.s32 %v1660, %v1662
    %v1664 = vrot.slane %v1636, %v1663
    %v1665 = vcombine.high %v1643, %v1643
    %v1666 = vcombine.high %v1650, %v1650
    %v1667 = vcombine.high %v1657, %v1657
    %v1668 = vcombine.high %v1664, %v1664
    %v1669 = vcombine.high %v1517, %v1517
    %v1671 = vunpack.c.l.s4 1966171168
    %v1672 = vunpack.c.0.s8 %v1671
    %v1673 = vlaneseq
    %v1674 = vshrl.u32 %v1673, 7
    %v1675 = vsub.s32 %v1672, %v1674
    %v1676 = vrot.slane %v1517, %v1675
    %v1678 = vunpack.c.l.s4 1966171168
    %v1679 = vunpack.c.0.s8 %v1678
    %v1680 = vlaneseq
    %v1681 = vshrl.u32 %v1680, 7
    %v1682 = vsub.s32 %v1679, %v1681
    %v1683 = vrot.slane %v1669, %v1682
    %v1684 = vcombine.high %v1676, %v1676
    %v1685 = vcombine.high %v1683, %v1683
    %v1687 = vunpack.c.l.s4 1966171168
    %v1688 = vunpack.c.0.s8 %v1687
    %v1689 = vlaneseq
    %v1690 = vshrl.u32 %v1689, 7
    %v1691 = vsub.s32 %v1688, %v1690
    %v1692 = vrot.slane %v1676, %v1691
    %v1694 = vunpack.c.l.s4 1966171168
    %v1695 = vunpack.c.0.s8 %v1694
    %v1696 = vlaneseq
    %v1697 = vshrl.u32 %v1696, 7
    %v1698 = vsub.s32 %v1695, %v1697
    %v1699 = vrot.slane %v1683, %v1698
    %v1701 = vunpack.c.l.s4 1966171168
    %v1702 = vunpack.c.0.s8 %v1701
    %v1703 = vlaneseq
    %v1704 = vshrl.u32 %v1703, 7
    %v1705 = vsub.s32 %v1702, %v1704
    %v1706 = vrot.slane %v1684, %v1705
    %v1708 = vunpack.c.l.s4 1966171168
    %v1709 = vunpack.c.0.s8 %v1708
    %v1710 = vlaneseq
    %v1711 = vshrl.u32 %v1710, 7
    %v1712 = vsub.s32 %v1709, %v1711
    %v1713 = vrot.slane %v1685, %v1712
    %v1714 = vcombine.high %v1692, %v1692
    %v1715 = vcombine.high %v1699, %v1699
    %v1716 = vcombine.high %v1706, %v1706
    %v1717 = vcombine.high %v1713, %v1713
    %v1718 = vlaneseq
    %v1719 = vshrl.u32 %v1718, 7
    %v1720 = vsub.s32 0, %v1719
    %v1721 = vrot.slane %v1545, %v1720
    %v1722 = vlaneseq
    %v1723 = vshrl.u32 %v1722, 7
    %v1724 = vsub.s32 0, %v1723
    %v1725 = vrot.slane %v1559, %v1724
    %v1726 = vlaneseq
    %v1727 = vshrl.u32 %v1726, 7
    %v1728 = vsub.s32 0, %v1727
    %v1729 = vrot.slane %v1567, %v1728
    %v1730 = vlaneseq
    %v1731 = vshrl.u32 %v1730, 7
    %v1732 = vsub.s32 0, %v1731
    %v1733 = vrot.slane %v1569, %v1732
    %v1734 = vlaneseq
    %v1735 = vshrl.u32 %v1734, 7
    %v1736 = vsub.s32 0, %v1735
    %v1737 = vrot.slane %v1552, %v1736
    %v1738 = vlaneseq
    %v1739 = vshrl.u32 %v1738, 7
    %v1740 = vsub.s32 0, %v1739
    %v1741 = vrot.slane %v1566, %v1740
    %v1742 = vlaneseq
    %v1743 = vshrl.u32 %v1742, 7
    %v1744 = vsub.s32 0, %v1743
    %v1745 = vrot.slane %v1568, %v1744
    %v1746 = vlaneseq
    %v1747 = vshrl.u32 %v1746, 7
    %v1748 = vsub.s32 0, %v1747
    %v1749 = vrot.slane %v1570, %v1748
    %v1750 = vlaneseq
    %v1751 = vshrl.u32 %v1750, 7
    %v1752 = vsub.s32 0, %v1751
    %v1753 = vrot.slane %v1594, %v1752
    %v1754 = vlaneseq
    %v1755 = vshrl.u32 %v1754, 7
    %v1756 = vsub.s32 0, %v1755
    %v1757 = vrot.slane %v1608, %v1756
    %v1758 = vlaneseq
    %v1759 = vshrl.u32 %v1758, 7
    %v1760 = vsub.s32 0, %v1759
    %v1761 = vrot.slane %v1616, %v1760
    %v1762 = vlaneseq
    %v1763 = vshrl.u32 %v1762, 7
    %v1764 = vsub.s32 0, %v1763
    %v1765 = vrot.slane %v1618, %v1764
    %v1766 = vlaneseq
    %v1767 = vshrl.u32 %v1766, 7
    %v1768 = vsub.s32 0, %v1767
    %v1769 = vrot.slane %v1601, %v1768
    %v1770 = vlaneseq
    %v1771 = vshrl.u32 %v1770, 7
    %v1772 = vsub.s32 0, %v1771
    %v1773 = vrot.slane %v1615, %v1772
    %v1774 = vlaneseq
    %v1775 = vshrl.u32 %v1774, 7
    %v1776 = vsub.s32 0, %v1775
    %v1777 = vrot.slane %v1617, %v1776
    %v1778 = vlaneseq
    %v1779 = vshrl.u32 %v1778, 7
    %v1780 = vsub.s32 0, %v1779
    %v1781 = vrot.slane %v1619, %v1780
    %v1782 = vlaneseq
    %v1783 = vshrl.u32 %v1782, 7
    %v1784 = vsub.s32 0, %v1783
    %v1785 = vrot.slane %v1643, %v1784
    %v1786 = vlaneseq
    %v1787 = vshrl.u32 %v1786, 7
    %v1788 = vsub.s32 0, %v1787
    %v1789 = vrot.slane %v1657, %v1788
    %v1790 = vlaneseq
    %v1791 = vshrl.u32 %v1790, 7
    %v1792 = vsub.s32 0, %v1791
    %v1793 = vrot.slane %v1665, %v1792
    %v1794 = vlaneseq
    %v1795 = vshrl.u32 %v1794, 7
    %v1796 = vsub.s32 0, %v1795
    %v1797 = vrot.slane %v1667, %v1796
    %v1798 = vlaneseq
    %v1799 = vshrl.u32 %v1798, 7
    %v1800 = vsub.s32 0, %v1799
    %v1801 = vrot.slane %v1650, %v1800
    %v1802 = vlaneseq
    %v1803 = vshrl.u32 %v1802, 7
    %v1804 = vsub.s32 0, %v1803
    %v1805 = vrot.slane %v1664, %v1804
    %v1806 = vlaneseq
    %v1807 = vshrl.u32 %v1806, 7
    %v1808 = vsub.s32 0, %v1807
    %v1809 = vrot.slane %v1666, %v1808
    %v1810 = vlaneseq
    %v1811 = vshrl.u32 %v1810, 7
    %v1812 = vsub.s32 0, %v1811
    %v1813 = vrot.slane %v1668, %v1812
    %v1814 = vlaneseq
    %v1815 = vshrl.u32 %v1814, 7
    %v1816 = vsub.s32 0, %v1815
    %v1817 = vrot.slane %v1692, %v1816
    %v1818 = vlaneseq
    %v1819 = vshrl.u32 %v1818, 7
    %v1820 = vsub.s32 0, %v1819
    %v1821 = vrot.slane %v1706, %v1820
    %v1822 = vlaneseq
    %v1823 = vshrl.u32 %v1822, 7
    %v1824 = vsub.s32 0, %v1823
    %v1825 = vrot.slane %v1714, %v1824
    %v1826 = vlaneseq
    %v1827 = vshrl.u32 %v1826, 7
    %v1828 = vsub.s32 0, %v1827
    %v1829 = vrot.slane %v1716, %v1828
    %v1830 = vlaneseq
    %v1831 = vshrl.u32 %v1830, 7
    %v1832 = vsub.s32 0, %v1831
    %v1833 = vrot.slane %v1699, %v1832
    %v1834 = vlaneseq
    %v1835 = vshrl.u32 %v1834, 7
    %v1836 = vsub.s32 0, %v1835
    %v1837 = vrot.slane %v1713, %v1836
    %v1838 = vlaneseq
    %v1839 = vshrl.u32 %v1838, 7
    %v1840 = vsub.s32 0, %v1839
    %v1841 = vrot.slane %v1715, %v1840
    %v1842 = vlaneseq
    %v1843 = vshrl.u32 %v1842, 7
    %v1844 = vsub.s32 0, %v1843
    %v1845 = vrot.slane %v1717, %v1844
    %v1878 = vmul.f32 %v327, %v1721
    %v1879 = vmul.f32 %v331, %v1721
    %v1880 = vmul.f32 %v338, %v1725
    %v1881 = vmul.f32 %v342, %v1725
    %v1882 = vmul.f32 %v349, %v1729
    %v1883 = vmul.f32 %v353, %v1729
    %v1884 = vmul.f32 %v360, %v1733
    %v1885 = vmul.f32 %v364, %v1733
    %v1886 = vmul.f32 %v371, %v1737
    %v1887 = vmul.f32 %v375, %v1737
    %v1888 = vmul.f32 %v382, %v1741
    %v1889 = vmul.f32 %v386, %v1741
    %v1890 = vmul.f32 %v393, %v1745
    %v1891 = vmul.f32 %v397, %v1745
    %v1892 = vmul.f32 %v404, %v1749
    %v1893 = vmul.f32 %v408, %v1749
    %v1894 = vmul.f32 %v415, %v1753
    %v1895 = vmul.f32 %v419, %v1753
    %v1896 = vmul.f32 %v426, %v1757
    %v1897 = vmul.f32 %v430, %v1757
    %v1898 = vmul.f32 %v437, %v1761
    %v1899 = vmul.f32 %v441, %v1761
    %v1900 = vmul.f32 %v448, %v1765
    %v1901 = vmul.f32 %v452, %v1765
    %v1902 = vmul.f32 %v459, %v1769
    %v1903 = vmul.f32 %v463, %v1769
    %v1904 = vmul.f32 %v470, %v1773
    %v1905 = vmul.f32 %v474, %v1773
    %v1906 = vmul.f32 %v481, %v1777
    %v1907 = vmul.f32 %v485, %v1777
    %v1908 = vmul.f32 %v492, %v1781
    %v1909 = vmul.f32 %v496, %v1781
    %v1910 = vmul.f32 %v503, %v1785
    %v1911 = vmul.f32 %v507, %v1785
    %v1912 = vmul.f32 %v514, %v1789
    %v1913 = vmul.f32 %v518, %v1789
    %v1914 = vmul.f32 %v525, %v1793
    %v1915 = vmul.f32 %v529, %v1793
    %v1916 = vmul.f32 %v536, %v1797
    %v1917 = vmul.f32 %v540, %v1797
    %v1918 = vmul.f32 %v547, %v1801
    %v1919 = vmul.f32 %v551, %v1801
    %v1920 = vmul.f32 %v558, %v1805
    %v1921 = vmul.f32 %v562, %v1805
    %v1922 = vmul.f32 %v569, %v1809
    %v1923 = vmul.f32 %v573, %v1809
    %v1924 = vmul.f32 %v580, %v1813
    %v1925 = vmul.f32 %v584, %v1813
    %v1926 = vmul.f32 %v591, %v1817
    %v1927 = vmul.f32 %v595, %v1817
    %v1928 = vmul.f32 %v602, %v1821
    %v1929 = vmul.f32 %v606, %v1821
    %v1930 = vmul.f32 %v613, %v1825
    %v1931 = vmul.f32 %v617, %v1825
    %v1932 = vmul.f32 %v624, %v1829
    %v1933 = vmul.f32 %v628, %v1829
    %v1934 = vmul.f32 %v635, %v1833
    %v1935 = vmul.f32 %v639, %v1833
    %v1936 = vmul.f32 %v646, %v1837
    %v1937 = vmul.f32 %v650, %v1837
    %v1938 = vmul.f32 %v657, %v1841
    %v1939 = vmul.f32 %v661, %v1841
    %v1940 = vmul.f32 %v668, %v1845
    %v1941 = vmul.f32 %v672, %v1845
    %v1942 = vsel %vm219, %v1878, -inf
    %v1943 = vsel %vm219, %v1880, -inf
    %v1944 = vsel %vm219, %v1882, -inf
    %v1945 = vmax.f32 %v1942, %v1944
    %v1946 = vsel %vm219, %v1884, -inf
    %v1947 = vmax.f32 %v1943, %v1946
    %v1948 = vsel %vm219, %v1886, -inf
    %v1949 = vmax.f32 %v1945, %v1948
    %v1950 = vsel %vm219, %v1888, -inf
    %v1951 = vmax.f32 %v1947, %v1950
    %v1952 = vsel %vm219, %v1890, -inf
    %v1953 = vmax.f32 %v1949, %v1952
    %v1954 = vsel %vm219, %v1892, -inf
    %v1955 = vmax.f32 %v1951, %v1954
    %v1956 = vsel %vm219, %v1894, -inf
    %v1957 = vmax.f32 %v1953, %v1956
    %v1958 = vsel %vm219, %v1896, -inf
    %v1959 = vmax.f32 %v1955, %v1958
    %v1960 = vsel %vm219, %v1898, -inf
    %v1961 = vmax.f32 %v1957, %v1960
    %v1962 = vsel %vm219, %v1900, -inf
    %v1963 = vmax.f32 %v1959, %v1962
    %v1964 = vsel %vm219, %v1902, -inf
    %v1965 = vmax.f32 %v1961, %v1964
    %v1966 = vsel %vm219, %v1904, -inf
    %v1967 = vmax.f32 %v1963, %v1966
    %v1968 = vsel %vm219, %v1906, -inf
    %v1969 = vmax.f32 %v1965, %v1968
    %v1970 = vsel %vm219, %v1908, -inf
    %v1971 = vmax.f32 %v1967, %v1970
    %v1972 = vsel %vm219, %v1910, -inf
    %v1973 = vmax.f32 %v1969, %v1972
    %v1974 = vsel %vm219, %v1912, -inf
    %v1975 = vmax.f32 %v1971, %v1974
    %v1976 = vsel %vm219, %v1914, -inf
    %v1977 = vmax.f32 %v1973, %v1976
    %v1978 = vsel %vm219, %v1916, -inf
    %v1979 = vmax.f32 %v1975, %v1978
    %v1980 = vsel %vm219, %v1918, -inf
    %v1981 = vmax.f32 %v1977, %v1980
    %v1982 = vsel %vm219, %v1920, -inf
    %v1983 = vmax.f32 %v1979, %v1982
    %v1984 = vsel %vm219, %v1922, -inf
    %v1985 = vmax.f32 %v1981, %v1984
    %v1986 = vsel %vm219, %v1924, -inf
    %v1987 = vmax.f32 %v1983, %v1986
    %v1988 = vsel %vm219, %v1926, -inf
    %v1989 = vmax.f32 %v1985, %v1988
    %v1990 = vsel %vm219, %v1928, -inf
    %v1991 = vmax.f32 %v1987, %v1990
    %v1992 = vsel %vm219, %v1930, -inf
    %v1993 = vmax.f32 %v1989, %v1992
    %v1994 = vsel %vm219, %v1932, -inf
    %v1995 = vmax.f32 %v1991, %v1994
    %v1996 = vsel %vm219, %v1934, -inf
    %v1997 = vmax.f32 %v1993, %v1996
    %v1998 = vsel %vm219, %v1936, -inf
    %v1999 = vmax.f32 %v1995, %v1998
    %v2000 = vsel %vm219, %v1938, -inf
    %v2001 = vmax.f32 %v1997, %v2000
    %v2002 = vsel %vm219, %v1940, -inf
    %v2003 = vmax.f32 %v1999, %v2002
    %v2004 = vmax.f32 %v2001, %v2003
    %v2005 = vsel %vm219, %v1879, -inf
    %v2006 = vsel %vm219, %v1881, -inf
    %v2007 = vsel %vm219, %v1883, -inf
    %v2008 = vmax.f32 %v2005, %v2007
    %v2009 = vsel %vm219, %v1885, -inf
    %v2010 = vmax.f32 %v2006, %v2009
    %v2011 = vsel %vm219, %v1887, -inf
    %v2012 = vmax.f32 %v2008, %v2011
    %v2013 = vsel %vm219, %v1889, -inf
    %v2014 = vmax.f32 %v2010, %v2013
    %v2015 = vsel %vm219, %v1891, -inf
    %v2016 = vmax.f32 %v2012, %v2015
    %v2017 = vsel %vm219, %v1893, -inf
    %v2018 = vmax.f32 %v2014, %v2017
    %v2019 = vsel %vm219, %v1895, -inf
    %v2020 = vmax.f32 %v2016, %v2019
    %v2021 = vsel %vm219, %v1897, -inf
    %v2022 = vmax.f32 %v2018, %v2021
    %v2023 = vsel %vm219, %v1899, -inf
    %v2024 = vmax.f32 %v2020, %v2023
    %v2025 = vsel %vm219, %v1901, -inf
    %v2026 = vmax.f32 %v2022, %v2025
    %v2027 = vsel %vm219, %v1903, -inf
    %v2028 = vmax.f32 %v2024, %v2027
    %v2029 = vsel %vm219, %v1905, -inf
    %v2030 = vmax.f32 %v2026, %v2029
    %v2031 = vsel %vm219, %v1907, -inf
    %v2032 = vmax.f32 %v2028, %v2031
    %v2033 = vsel %vm219, %v1909, -inf
    %v2034 = vmax.f32 %v2030, %v2033
    %v2035 = vsel %vm219, %v1911, -inf
    %v2036 = vmax.f32 %v2032, %v2035
    %v2037 = vsel %vm219, %v1913, -inf
    %v2038 = vmax.f32 %v2034, %v2037
    %v2039 = vsel %vm219, %v1915, -inf
    %v2040 = vmax.f32 %v2036, %v2039
    %v2041 = vsel %vm219, %v1917, -inf
    %v2042 = vmax.f32 %v2038, %v2041
    %v2043 = vsel %vm219, %v1919, -inf
    %v2044 = vmax.f32 %v2040, %v2043
    %v2045 = vsel %vm219, %v1921, -inf
    %v2046 = vmax.f32 %v2042, %v2045
    %v2047 = vsel %vm219, %v1923, -inf
    %v2048 = vmax.f32 %v2044, %v2047
    %v2049 = vsel %vm219, %v1925, -inf
    %v2050 = vmax.f32 %v2046, %v2049
    %v2051 = vsel %vm219, %v1927, -inf
    %v2052 = vmax.f32 %v2048, %v2051
    %v2053 = vsel %vm219, %v1929, -inf
    %v2054 = vmax.f32 %v2050, %v2053
    %v2055 = vsel %vm219, %v1931, -inf
    %v2056 = vmax.f32 %v2052, %v2055
    %v2057 = vsel %vm219, %v1933, -inf
    %v2058 = vmax.f32 %v2054, %v2057
    %v2059 = vsel %vm219, %v1935, -inf
    %v2060 = vmax.f32 %v2056, %v2059
    %v2061 = vsel %vm219, %v1937, -inf
    %v2062 = vmax.f32 %v2058, %v2061
    %v2063 = vsel %vm219, %v1939, -inf
    %v2064 = vmax.f32 %v2060, %v2063
    %v2065 = vsel %vm219, %v1941, -inf
    %v2066 = vmax.f32 %v2062, %v2065
    %v2067 = vmax.f32 %v2064, %v2066
    %v2068 = vsel %vm219, %v2004, 0.0
    %v2069 = vsel %vm219, %v2067, 0.0
    %v2070 = vadd.f32 %v2068, %v2069
    %v2071 = vrot.slane %v2070, 4
    %v2072 = vadd.f32 %v2070, %v2071
    %v2073 = vrot.slane %v2072, 2
    %v2074 = vadd.f32 %v2072, %v2073
    %v2075 = vrot.slane %v2074, 1
    %v2076 = vadd.f32 %v2074, %v2075
    %v2077 = vmul.f32 %v2076, %v1232
    %v2078 = vmul.f32 %v2004, %v2004
    %v2079 = vmul.f32 %v2067, %v2067
    %v2080 = vsel %vm219, %v2078, 0.0
    %v2081 = vsel %vm219, %v2079, 0.0
    %v2082 = vadd.f32 %v2080, %v2081
    %v2083 = vrot.slane %v2082, 4
    %v2084 = vadd.f32 %v2082, %v2083
    %v2085 = vrot.slane %v2084, 2
    %v2086 = vadd.f32 %v2084, %v2085
    %v2087 = vrot.slane %v2086, 1
    %v2088 = vadd.f32 %v2086, %v2087
    %v2089 = vmul.f32 %v2088, %v1232
    %v2090 = vmul.f32 %v2077, %v2077
    %v2091 = vsub.f32 %v2089, %v2090
    %v2092 = vmax.f32 %v2091, 0.0
    %v2093 = vsub.f32 %v2004, %v2077
    %v2094 = vsub.f32 %v2067, %v2077
    %v2095 = vadd.f32 %v2092, 1e-05
    %v2096 = vrsqrt.pop %v2095
    %v2097 = vmul.f32 %v2093, %v2096
    %v2098 = vmul.f32 %v2094, %v2096
    %v2099 = vlaneseq
    %v2100 = vshrl.u32 %v2099, 7
    %v2101 = vsub.s32 4, %v2100
    %v2102 = vrot.slane %v34, %v2101
    %v2103 = vmul.f32 %v2097, %v2102
    %v2104 = vmul.f32 %v2098, %v2102
    %v2105 = vlaneseq
    %v2106 = vshrl.u32 %v2105, 7
    %v2107 = vsub.s32 5, %v2106
    %v2108 = vrot.slane %v34, %v2107
    %v2109 = vadd.f32 %v2103, %v2108
    %v2110 = vadd.f32 %v2104, %v2108
    %v2111 = vmax.f32 %v2109, 0.0
    %v2112 = vmax.f32 %v2110, 0.0
    %v2114 = vsel %vm219, %v2111, 0
    %v2117 = vsel %vm219, %v2112, 0
    %2119 = vmatprep.subr.mxu0 0.0
    %2120 = vmatpush1.msra.mxu0 %v50
    %2121 = vmatprep.subr.mxu0 0.0
    %2122 = vmatpush1.msra.mxu0 %v51
    %2123 = vmatprep.subr.mxu0 0.0
    %2124 = vmatpush1.msra.mxu0 %v52
    %2125 = vmatprep.subr.mxu0 0.0
    %2126 = vmatpush1.msra.mxu0 %v53
    %2127 = vmatprep.subr.mxu0 0.0
    %2128 = vmatpush1.msra.mxu0 0.0
    %2129 = vmatprep.subr.mxu0 0.0
    %2130 = vmatpush1.msra.mxu0 0.0
    %2131 = vmatprep.subr.mxu0 0.0
    %2132 = vmatpush1.msra.mxu0 0.0
    %2133 = vmatprep.subr.mxu0 0.0
    %2134 = vmatpush1.msra.mxu0 0.0
    %2135 = vmatprep.subr.mxu0 0.0
    %2136 = vmatpush1.msra.mxu0 0.0
    %2137 = vmatprep.subr.mxu0 0.0
    %2138 = vmatpush1.msra.mxu0 0.0
    %2139 = vmatprep.subr.mxu0 0.0
    %2140 = vmatpush1.msra.mxu0 0.0
    %2141 = vmatprep.subr.mxu0 0.0
    %2142 = vmatpush1.msra.mxu0 0.0
    %2143 = vmatprep.subr.mxu0 0.0
    %2144 = vmatpush1.msra.mxu0 0.0
    %2145 = vmatprep.subr.mxu0 0.0
    %2146 = vmatpush1.msra.mxu0 0.0
    %2147 = vmatprep.subr.mxu0 0.0
    %2148 = vmatpush1.msra.mxu0 0.0
    %2149 = vmatprep.subr.mxu0 0.0
    %2150 = vmatpush1.msra.mxu0 0.0
    %2151 = vmatprep.subr.mxu0 0.0
    %2152 = vmatpush1.msra.mxu0 0.0
    %2153 = vmatprep.subr.mxu0 0.0
    %2154 = vmatpush1.msra.mxu0 0.0
    %2155 = vmatprep.subr.mxu0 0.0
    %2156 = vmatpush1.msra.mxu0 0.0
    %2157 = vmatprep.subr.mxu0 0.0
    %2158 = vmatpush1.msra.mxu0 0.0
    %2159 = vmatprep.subr.mxu0 0.0
    %2160 = vmatpush1.msra.mxu0 0.0
    %2161 = vmatprep.subr.mxu0 0.0
    %2162 = vmatpush1.msra.mxu0 0.0
    %2163 = vmatprep.subr.mxu0 0.0
    %2164 = vmatpush1.msra.mxu0 0.0
    %2165 = vmatprep.subr.mxu0 0.0
    %2166 = vmatpush1.msra.mxu0 0.0
    %2167 = vmatprep.subr.mxu0 0.0
    %2168 = vmatpush1.msra.mxu0 0.0
    %2169 = vmatprep.subr.mxu0 0.0
    %2170 = vmatpush1.msra.mxu0 0.0
    %2171 = vmatprep.subr.mxu0 0.0
    %2172 = vmatpush1.msra.mxu0 0.0
    %2173 = vmatprep.subr.mxu0 0.0
    %2174 = vmatpush1.msra.mxu0 0.0
    %2175 = vmatprep.subr.mxu0 0.0
    %2176 = vmatpush1.msra.mxu0 0.0
    %2177 = vmatprep.subr.mxu0 0.0
    %2178 = vmatpush1.msra.mxu0 0.0
    %2179 = vmatprep.subr.mxu0 0.0
    %2180 = vmatpush1.msra.mxu0 0.0
    %2181 = vmatprep.subr.mxu0 0.0
    %2182 = vmatpush1.msra.mxu0 0.0
    %2183 = vmatprep.mubr.f32.mxu0 0.0
    %2184 = vmatmul.mubr.f32.gmra.mrb[0].mxu0 %v2114
    %v2185 = vpop.f32.mrb[0].mxu0
    %v2186 = vadd.f32 0.0, %v2185
    %v2187 = vpop.f32.mrb[0].mxu0
    %2188 = vmatprep.mubr.f32.mxu0 0.0
    %2189 = vmatmul.mubr.f32.gmra.mrb[0].mxu0 %v2117
    %v2190 = vpop.f32.mrb[0].mxu0
    %v2191 = vadd.f32 0.0, %v2190
    %v2192 = vpop.f32.mrb[0].mxu0
    %2193 = vdwg.mxu0
    %2194 = vmatprep.subr.mxu0 0.0
    %2195 = vmatpush1.msra.mxu0 %v54
    %2196 = vmatprep.subr.mxu0 0.0
    %2197 = vmatpush1.msra.mxu0 %v55
    %2198 = vmatprep.subr.mxu0 0.0
    %2199 = vmatpush1.msra.mxu0 %v56
    %2200 = vmatprep.subr.mxu0 0.0
    %2201 = vmatpush1.msra.mxu0 %v57
    %2202 = vmatprep.subr.mxu0 0.0
    %2203 = vmatpush1.msra.mxu0 0.0
    %2204 = vmatprep.subr.mxu0 0.0
    %2205 = vmatpush1.msra.mxu0 0.0
    %2206 = vmatprep.subr.mxu0 0.0
    %2207 = vmatpush1.msra.mxu0 0.0
    %2208 = vmatprep.subr.mxu0 0.0
    %2209 = vmatpush1.msra.mxu0 0.0
    %2210 = vmatprep.subr.mxu0 0.0
    %2211 = vmatpush1.msra.mxu0 0.0
    %2212 = vmatprep.subr.mxu0 0.0
    %2213 = vmatpush1.msra.mxu0 0.0
    %2214 = vmatprep.subr.mxu0 0.0
    %2215 = vmatpush1.msra.mxu0 0.0
    %2216 = vmatprep.subr.mxu0 0.0
    %2217 = vmatpush1.msra.mxu0 0.0
    %2218 = vmatprep.subr.mxu0 0.0
    %2219 = vmatpush1.msra.mxu0 0.0
    %2220 = vmatprep.subr.mxu0 0.0
    %2221 = vmatpush1.msra.mxu0 0.0
    %2222 = vmatprep.subr.mxu0 0.0
    %2223 = vmatpush1.msra.mxu0 0.0
    %2224 = vmatprep.subr.mxu0 0.0
    %2225 = vmatpush1.msra.mxu0 0.0
    %2226 = vmatprep.subr.mxu0 0.0
    %2227 = vmatpush1.msra.mxu0 0.0
    %2228 = vmatprep.subr.mxu0 0.0
    %2229 = vmatpush1.msra.mxu0 0.0
    %2230 = vmatprep.subr.mxu0 0.0
    %2231 = vmatpush1.msra.mxu0 0.0
    %2232 = vmatprep.subr.mxu0 0.0
    %2233 = vmatpush1.msra.mxu0 0.0
    %2234 = vmatprep.subr.mxu0 0.0
    %2235 = vmatpush1.msra.mxu0 0.0
    %2236 = vmatprep.subr.mxu0 0.0
    %2237 = vmatpush1.msra.mxu0 0.0
    %2238 = vmatprep.subr.mxu0 0.0
    %2239 = vmatpush1.msra.mxu0 0.0
    %2240 = vmatprep.subr.mxu0 0.0
    %2241 = vmatpush1.msra.mxu0 0.0
    %2242 = vmatprep.subr.mxu0 0.0
    %2243 = vmatpush1.msra.mxu0 0.0
    %2244 = vmatprep.subr.mxu0 0.0
    %2245 = vmatpush1.msra.mxu0 0.0
    %2246 = vmatprep.subr.mxu0 0.0
    %2247 = vmatpush1.msra.mxu0 0.0
    %2248 = vmatprep.subr.mxu0 0.0
    %2249 = vmatpush1.msra.mxu0 0.0
    %2250 = vmatprep.subr.mxu0 0.0
    %2251 = vmatpush1.msra.mxu0 0.0
    %2252 = vmatprep.subr.mxu0 0.0
    %2253 = vmatpush1.msra.mxu0 0.0
    %2254 = vmatprep.subr.mxu0 0.0
    %2255 = vmatpush1.msra.mxu0 0.0
    %2256 = vmatprep.subr.mxu0 0.0
    %2257 = vmatpush1.msra.mxu0 0.0
    %2258 = vmatprep.mubr.f32.mxu0 0.0
    %2259 = vmatmul.mubr.f32.gmra.mrb[0].mxu0 %v2114
    %v2260 = vpop.f32.mrb[0].mxu0
    %v2261 = vadd.f32 0.0, %v2260
    %v2262 = vpop.f32.mrb[0].mxu0
    %2263 = vmatprep.mubr.f32.mxu0 0.0
    %2264 = vmatmul.mubr.f32.gmra.mrb[0].mxu0 %v2117
    %v2265 = vpop.f32.mrb[0].mxu0
    %v2266 = vadd.f32 0.0, %v2265
    %v2267 = vpop.f32.mrb[0].mxu0
    %2268 = vdwg.mxu0
    %v2269 = vlaneseq
    %v2270 = vshrl.u32 %v2269, 7
    %v2271 = vsub.s32 6, %v2270
    %v2272 = vrot.slane %v34, %v2271
    %2273 = vmatprep.subr.mxu0 0.0
    %2274 = vmatpush1.msra.mxu0 %v2186
    %2275 = vmatprep.subr.mxu0 0.0
    %2276 = vmatpush1.msra.mxu0 %v2191
    %2277 = vmatprep.subr.mxu0 0.0
    %2278 = vmatpush1.msra.mxu0 %v2261
    %2279 = vmatprep.subr.mxu0 0.0
    %2280 = vmatpush1.msra.mxu0 %v2266
    %2281 = vmatprep.subr.mxu0 0.0
    %2282 = vmatpush1.msra.mxu0 0.0
    %2283 = vmatprep.subr.mxu0 0.0
    %2284 = vmatpush1.msra.mxu0 0.0
    %2285 = vmatprep.subr.mxu0 0.0
    %2286 = vmatpush1.msra.mxu0 0.0
    %2287 = vmatprep.subr.mxu0 0.0
    %2288 = vmatpush1.msra.mxu0 0.0
    %2289 = vmatprep.subr.mxu0 0.0
    %2290 = vmatpush1.msra.mxu0 0.0
    %2291 = vmatprep.subr.mxu0 0.0
    %2292 = vmatpush1.msra.mxu0 0.0
    %2293 = vmatprep.subr.mxu0 0.0
    %2294 = vmatpush1.msra.mxu0 0.0
    %2295 = vmatprep.subr.mxu0 0.0
    %2296 = vmatpush1.msra.mxu0 0.0
    %2297 = vmatprep.subr.mxu0 0.0
    %2298 = vmatpush1.msra.mxu0 0.0
    %2299 = vmatprep.subr.mxu0 0.0
    %2300 = vmatpush1.msra.mxu0 0.0
    %2301 = vmatprep.subr.mxu0 0.0
    %2302 = vmatpush1.msra.mxu0 0.0
    %2303 = vmatprep.subr.mxu0 0.0
    %2304 = vmatpush1.msra.mxu0 0.0
    %2305 = vmatprep.subr.mxu0 0.0
    %2306 = vmatpush1.msra.mxu0 0.0
    %2307 = vmatprep.subr.mxu0 0.0
    %2308 = vmatpush1.msra.mxu0 0.0
    %2309 = vmatprep.subr.mxu0 0.0
    %2310 = vmatpush1.msra.mxu0 0.0
    %2311 = vmatprep.subr.mxu0 0.0
    %2312 = vmatpush1.msra.mxu0 0.0
    %2313 = vmatprep.subr.mxu0 0.0
    %2314 = vmatpush1.msra.mxu0 0.0
    %2315 = vmatprep.subr.mxu0 0.0
    %2316 = vmatpush1.msra.mxu0 0.0
    %2317 = vmatprep.subr.mxu0 0.0
    %2318 = vmatpush1.msra.mxu0 0.0
    %2319 = vmatprep.subr.mxu0 0.0
    %2320 = vmatpush1.msra.mxu0 0.0
    %2321 = vmatprep.subr.mxu0 0.0
    %2322 = vmatpush1.msra.mxu0 0.0
    %2323 = vmatprep.subr.mxu0 0.0
    %2324 = vmatpush1.msra.mxu0 0.0
    %2325 = vmatprep.subr.mxu0 0.0
    %2326 = vmatpush1.msra.mxu0 0.0
    %2327 = vmatprep.subr.mxu0 0.0
    %2328 = vmatpush1.msra.mxu0 0.0
    %2329 = vmatprep.subr.mxu0 0.0
    %2330 = vmatpush1.msra.mxu0 0.0
    %2331 = vmatprep.subr.mxu0 0.0
    %2332 = vmatpush1.msra.mxu0 0.0
    %2333 = vmatprep.subr.mxu0 0.0
    %2334 = vmatpush1.msra.mxu0 0.0
    %2335 = vmatprep.subr.mxu0 0.0
    %2336 = vmatpush1.msra.mxu0 0.0
    %2337 = vmatprep.mubr.f32.mxu0 0.0
    %2338 = vmatmul.mubr.f32.gmra.mrb[0].mxu0 %v221
    %v2339 = vpop.f32.mrb[0].mxu0
    %v2340 = vadd.f32 %v2272, %v2339
    %v2341 = vpop.f32.mrb[0].mxu0
    %2342 = vmatprep.mubr.f32.mxu0 0.0
    %2343 = vmatmul.mubr.f32.gmra.mrb[0].mxu0 %v224
    %v2344 = vpop.f32.mrb[0].mxu0
    %v2345 = vadd.f32 %v2272, %v2344
    %v2346 = vpop.f32.mrb[0].mxu0
    %2347 = vmatprep.mubr.f32.mxu0 0.0
    %2348 = vmatmul.mubr.f32.gmra.mrb[0].mxu0 %v227
    %v2349 = vpop.f32.mrb[0].mxu0
    %v2350 = vadd.f32 %v2272, %v2349
    %v2351 = vpop.f32.mrb[0].mxu0
    %2352 = vmatprep.mubr.f32.mxu0 0.0
    %2353 = vmatmul.mubr.f32.gmra.mrb[0].mxu0 %v230
    %v2354 = vpop.f32.mrb[0].mxu0
    %v2355 = vadd.f32 %v2272, %v2354
    %v2356 = vpop.f32.mrb[0].mxu0
    %2357 = vdwg.mxu0
    %v2358 = vmax.f32 %v2340, 0.0
    %v2359 = vmax.f32 %v2345, 0.0
    %v2360 = vmax.f32 %v2350, 0.0
    %v2361 = vmax.f32 %v2355, 0.0
    %v2366 = vcombine.high %v2358, %v2358
    %v2368 = vunpack.c.l.s4 1966171168
    %v2369 = vunpack.c.0.s8 %v2368
    %v2370 = vlaneseq
    %v2371 = vshrl.u32 %v2370, 7
    %v2372 = vsub.s32 %v2369, %v2371
    %v2373 = vrot.slane %v2358, %v2372
    %v2375 = vunpack.c.l.s4 1966171168
    %v2376 = vunpack.c.0.s8 %v2375
    %v2377 = vlaneseq
    %v2378 = vshrl.u32 %v2377, 7
    %v2379 = vsub.s32 %v2376, %v2378
    %v2380 = vrot.slane %v2366, %v2379
    %v2381 = vcombine.high %v2373, %v2373
    %v2382 = vcombine.high %v2380, %v2380
    %v2384 = vunpack.c.l.s4 1966171168
    %v2385 = vunpack.c.0.s8 %v2384
    %v2386 = vlaneseq
    %v2387 = vshrl.u32 %v2386, 7
    %v2388 = vsub.s32 %v2385, %v2387
    %v2389 = vrot.slane %v2373, %v2388
    %v2391 = vunpack.c.l.s4 1966171168
    %v2392 = vunpack.c.0.s8 %v2391
    %v2393 = vlaneseq
    %v2394 = vshrl.u32 %v2393, 7
    %v2395 = vsub.s32 %v2392, %v2394
    %v2396 = vrot.slane %v2380, %v2395
    %v2398 = vunpack.c.l.s4 1966171168
    %v2399 = vunpack.c.0.s8 %v2398
    %v2400 = vlaneseq
    %v2401 = vshrl.u32 %v2400, 7
    %v2402 = vsub.s32 %v2399, %v2401
    %v2403 = vrot.slane %v2381, %v2402
    %v2405 = vunpack.c.l.s4 1966171168
    %v2406 = vunpack.c.0.s8 %v2405
    %v2407 = vlaneseq
    %v2408 = vshrl.u32 %v2407, 7
    %v2409 = vsub.s32 %v2406, %v2408
    %v2410 = vrot.slane %v2382, %v2409
    %v2411 = vcombine.high %v2389, %v2389
    %v2412 = vcombine.high %v2396, %v2396
    %v2413 = vcombine.high %v2403, %v2403
    %v2414 = vcombine.high %v2410, %v2410
    %v2415 = vcombine.high %v2359, %v2359
    %v2417 = vunpack.c.l.s4 1966171168
    %v2418 = vunpack.c.0.s8 %v2417
    %v2419 = vlaneseq
    %v2420 = vshrl.u32 %v2419, 7
    %v2421 = vsub.s32 %v2418, %v2420
    %v2422 = vrot.slane %v2359, %v2421
    %v2424 = vunpack.c.l.s4 1966171168
    %v2425 = vunpack.c.0.s8 %v2424
    %v2426 = vlaneseq
    %v2427 = vshrl.u32 %v2426, 7
    %v2428 = vsub.s32 %v2425, %v2427
    %v2429 = vrot.slane %v2415, %v2428
    %v2430 = vcombine.high %v2422, %v2422
    %v2431 = vcombine.high %v2429, %v2429
    %v2433 = vunpack.c.l.s4 1966171168
    %v2434 = vunpack.c.0.s8 %v2433
    %v2435 = vlaneseq
    %v2436 = vshrl.u32 %v2435, 7
    %v2437 = vsub.s32 %v2434, %v2436
    %v2438 = vrot.slane %v2422, %v2437
    %v2440 = vunpack.c.l.s4 1966171168
    %v2441 = vunpack.c.0.s8 %v2440
    %v2442 = vlaneseq
    %v2443 = vshrl.u32 %v2442, 7
    %v2444 = vsub.s32 %v2441, %v2443
    %v2445 = vrot.slane %v2429, %v2444
    %v2447 = vunpack.c.l.s4 1966171168
    %v2448 = vunpack.c.0.s8 %v2447
    %v2449 = vlaneseq
    %v2450 = vshrl.u32 %v2449, 7
    %v2451 = vsub.s32 %v2448, %v2450
    %v2452 = vrot.slane %v2430, %v2451
    %v2454 = vunpack.c.l.s4 1966171168
    %v2455 = vunpack.c.0.s8 %v2454
    %v2456 = vlaneseq
    %v2457 = vshrl.u32 %v2456, 7
    %v2458 = vsub.s32 %v2455, %v2457
    %v2459 = vrot.slane %v2431, %v2458
    %v2460 = vcombine.high %v2438, %v2438
    %v2461 = vcombine.high %v2445, %v2445
    %v2462 = vcombine.high %v2452, %v2452
    %v2463 = vcombine.high %v2459, %v2459
    %v2464 = vcombine.high %v2360, %v2360
    %v2466 = vunpack.c.l.s4 1966171168
    %v2467 = vunpack.c.0.s8 %v2466
    %v2468 = vlaneseq
    %v2469 = vshrl.u32 %v2468, 7
    %v2470 = vsub.s32 %v2467, %v2469
    %v2471 = vrot.slane %v2360, %v2470
    %v2473 = vunpack.c.l.s4 1966171168
    %v2474 = vunpack.c.0.s8 %v2473
    %v2475 = vlaneseq
    %v2476 = vshrl.u32 %v2475, 7
    %v2477 = vsub.s32 %v2474, %v2476
    %v2478 = vrot.slane %v2464, %v2477
    %v2479 = vcombine.high %v2471, %v2471
    %v2480 = vcombine.high %v2478, %v2478
    %v2482 = vunpack.c.l.s4 1966171168
    %v2483 = vunpack.c.0.s8 %v2482
    %v2484 = vlaneseq
    %v2485 = vshrl.u32 %v2484, 7
    %v2486 = vsub.s32 %v2483, %v2485
    %v2487 = vrot.slane %v2471, %v2486
    %v2489 = vunpack.c.l.s4 1966171168
    %v2490 = vunpack.c.0.s8 %v2489
    %v2491 = vlaneseq
    %v2492 = vshrl.u32 %v2491, 7
    %v2493 = vsub.s32 %v2490, %v2492
    %v2494 = vrot.slane %v2478, %v2493
    %v2496 = vunpack.c.l.s4 1966171168
    %v2497 = vunpack.c.0.s8 %v2496
    %v2498 = vlaneseq
    %v2499 = vshrl.u32 %v2498, 7
    %v2500 = vsub.s32 %v2497, %v2499
    %v2501 = vrot.slane %v2479, %v2500
    %v2503 = vunpack.c.l.s4 1966171168
    %v2504 = vunpack.c.0.s8 %v2503
    %v2505 = vlaneseq
    %v2506 = vshrl.u32 %v2505, 7
    %v2507 = vsub.s32 %v2504, %v2506
    %v2508 = vrot.slane %v2480, %v2507
    %v2509 = vcombine.high %v2487, %v2487
    %v2510 = vcombine.high %v2494, %v2494
    %v2511 = vcombine.high %v2501, %v2501
    %v2512 = vcombine.high %v2508, %v2508
    %v2513 = vcombine.high %v2361, %v2361
    %v2515 = vunpack.c.l.s4 1966171168
    %v2516 = vunpack.c.0.s8 %v2515
    %v2517 = vlaneseq
    %v2518 = vshrl.u32 %v2517, 7
    %v2519 = vsub.s32 %v2516, %v2518
    %v2520 = vrot.slane %v2361, %v2519
    %v2522 = vunpack.c.l.s4 1966171168
    %v2523 = vunpack.c.0.s8 %v2522
    %v2524 = vlaneseq
    %v2525 = vshrl.u32 %v2524, 7
    %v2526 = vsub.s32 %v2523, %v2525
    %v2527 = vrot.slane %v2513, %v2526
    %v2528 = vcombine.high %v2520, %v2520
    %v2529 = vcombine.high %v2527, %v2527
    %v2531 = vunpack.c.l.s4 1966171168
    %v2532 = vunpack.c.0.s8 %v2531
    %v2533 = vlaneseq
    %v2534 = vshrl.u32 %v2533, 7
    %v2535 = vsub.s32 %v2532, %v2534
    %v2536 = vrot.slane %v2520, %v2535
    %v2538 = vunpack.c.l.s4 1966171168
    %v2539 = vunpack.c.0.s8 %v2538
    %v2540 = vlaneseq
    %v2541 = vshrl.u32 %v2540, 7
    %v2542 = vsub.s32 %v2539, %v2541
    %v2543 = vrot.slane %v2527, %v2542
    %v2545 = vunpack.c.l.s4 1966171168
    %v2546 = vunpack.c.0.s8 %v2545
    %v2547 = vlaneseq
    %v2548 = vshrl.u32 %v2547, 7
    %v2549 = vsub.s32 %v2546, %v2548
    %v2550 = vrot.slane %v2528, %v2549
    %v2552 = vunpack.c.l.s4 1966171168
    %v2553 = vunpack.c.0.s8 %v2552
    %v2554 = vlaneseq
    %v2555 = vshrl.u32 %v2554, 7
    %v2556 = vsub.s32 %v2553, %v2555
    %v2557 = vrot.slane %v2529, %v2556
    %v2558 = vcombine.high %v2536, %v2536
    %v2559 = vcombine.high %v2543, %v2543
    %v2560 = vcombine.high %v2550, %v2550
    %v2561 = vcombine.high %v2557, %v2557
    %v2562 = vlaneseq
    %v2563 = vshrl.u32 %v2562, 7
    %v2564 = vsub.s32 0, %v2563
    %v2565 = vrot.slane %v2389, %v2564
    %v2566 = vlaneseq
    %v2567 = vshrl.u32 %v2566, 7
    %v2568 = vsub.s32 0, %v2567
    %v2569 = vrot.slane %v2403, %v2568
    %v2570 = vlaneseq
    %v2571 = vshrl.u32 %v2570, 7
    %v2572 = vsub.s32 0, %v2571
    %v2573 = vrot.slane %v2411, %v2572
    %v2574 = vlaneseq
    %v2575 = vshrl.u32 %v2574, 7
    %v2576 = vsub.s32 0, %v2575
    %v2577 = vrot.slane %v2413, %v2576
    %v2578 = vlaneseq
    %v2579 = vshrl.u32 %v2578, 7
    %v2580 = vsub.s32 0, %v2579
    %v2581 = vrot.slane %v2396, %v2580
    %v2582 = vlaneseq
    %v2583 = vshrl.u32 %v2582, 7
    %v2584 = vsub.s32 0, %v2583
    %v2585 = vrot.slane %v2410, %v2584
    %v2586 = vlaneseq
    %v2587 = vshrl.u32 %v2586, 7
    %v2588 = vsub.s32 0, %v2587
    %v2589 = vrot.slane %v2412, %v2588
    %v2590 = vlaneseq
    %v2591 = vshrl.u32 %v2590, 7
    %v2592 = vsub.s32 0, %v2591
    %v2593 = vrot.slane %v2414, %v2592
    %v2594 = vlaneseq
    %v2595 = vshrl.u32 %v2594, 7
    %v2596 = vsub.s32 0, %v2595
    %v2597 = vrot.slane %v2438, %v2596
    %v2598 = vlaneseq
    %v2599 = vshrl.u32 %v2598, 7
    %v2600 = vsub.s32 0, %v2599
    %v2601 = vrot.slane %v2452, %v2600
    %v2602 = vlaneseq
    %v2603 = vshrl.u32 %v2602, 7
    %v2604 = vsub.s32 0, %v2603
    %v2605 = vrot.slane %v2460, %v2604
    %v2606 = vlaneseq
    %v2607 = vshrl.u32 %v2606, 7
    %v2608 = vsub.s32 0, %v2607
    %v2609 = vrot.slane %v2462, %v2608
    %v2610 = vlaneseq
    %v2611 = vshrl.u32 %v2610, 7
    %v2612 = vsub.s32 0, %v2611
    %v2613 = vrot.slane %v2445, %v2612
    %v2614 = vlaneseq
    %v2615 = vshrl.u32 %v2614, 7
    %v2616 = vsub.s32 0, %v2615
    %v2617 = vrot.slane %v2459, %v2616
    %v2618 = vlaneseq
    %v2619 = vshrl.u32 %v2618, 7
    %v2620 = vsub.s32 0, %v2619
    %v2621 = vrot.slane %v2461, %v2620
    %v2622 = vlaneseq
    %v2623 = vshrl.u32 %v2622, 7
    %v2624 = vsub.s32 0, %v2623
    %v2625 = vrot.slane %v2463, %v2624
    %v2626 = vlaneseq
    %v2627 = vshrl.u32 %v2626, 7
    %v2628 = vsub.s32 0, %v2627
    %v2629 = vrot.slane %v2487, %v2628
    %v2630 = vlaneseq
    %v2631 = vshrl.u32 %v2630, 7
    %v2632 = vsub.s32 0, %v2631
    %v2633 = vrot.slane %v2501, %v2632
    %v2634 = vlaneseq
    %v2635 = vshrl.u32 %v2634, 7
    %v2636 = vsub.s32 0, %v2635
    %v2637 = vrot.slane %v2509, %v2636
    %v2638 = vlaneseq
    %v2639 = vshrl.u32 %v2638, 7
    %v2640 = vsub.s32 0, %v2639
    %v2641 = vrot.slane %v2511, %v2640
    %v2642 = vlaneseq
    %v2643 = vshrl.u32 %v2642, 7
    %v2644 = vsub.s32 0, %v2643
    %v2645 = vrot.slane %v2494, %v2644
    %v2646 = vlaneseq
    %v2647 = vshrl.u32 %v2646, 7
    %v2648 = vsub.s32 0, %v2647
    %v2649 = vrot.slane %v2508, %v2648
    %v2650 = vlaneseq
    %v2651 = vshrl.u32 %v2650, 7
    %v2652 = vsub.s32 0, %v2651
    %v2653 = vrot.slane %v2510, %v2652
    %v2654 = vlaneseq
    %v2655 = vshrl.u32 %v2654, 7
    %v2656 = vsub.s32 0, %v2655
    %v2657 = vrot.slane %v2512, %v2656
    %v2658 = vlaneseq
    %v2659 = vshrl.u32 %v2658, 7
    %v2660 = vsub.s32 0, %v2659
    %v2661 = vrot.slane %v2536, %v2660
    %v2662 = vlaneseq
    %v2663 = vshrl.u32 %v2662, 7
    %v2664 = vsub.s32 0, %v2663
    %v2665 = vrot.slane %v2550, %v2664
    %v2666 = vlaneseq
    %v2667 = vshrl.u32 %v2666, 7
    %v2668 = vsub.s32 0, %v2667
    %v2669 = vrot.slane %v2558, %v2668
    %v2670 = vlaneseq
    %v2671 = vshrl.u32 %v2670, 7
    %v2672 = vsub.s32 0, %v2671
    %v2673 = vrot.slane %v2560, %v2672
    %v2674 = vlaneseq
    %v2675 = vshrl.u32 %v2674, 7
    %v2676 = vsub.s32 0, %v2675
    %v2677 = vrot.slane %v2543, %v2676
    %v2678 = vlaneseq
    %v2679 = vshrl.u32 %v2678, 7
    %v2680 = vsub.s32 0, %v2679
    %v2681 = vrot.slane %v2557, %v2680
    %v2682 = vlaneseq
    %v2683 = vshrl.u32 %v2682, 7
    %v2684 = vsub.s32 0, %v2683
    %v2685 = vrot.slane %v2559, %v2684
    %v2686 = vlaneseq
    %v2687 = vshrl.u32 %v2686, 7
    %v2688 = vsub.s32 0, %v2687
    %v2689 = vrot.slane %v2561, %v2688
    %v2722 = vmul.f32 %v327, %v2565
    %v2723 = vmul.f32 %v331, %v2565
    %v2724 = vmul.f32 %v338, %v2569
    %v2725 = vmul.f32 %v342, %v2569
    %v2726 = vmul.f32 %v349, %v2573
    %v2727 = vmul.f32 %v353, %v2573
    %v2728 = vmul.f32 %v360, %v2577
    %v2729 = vmul.f32 %v364, %v2577
    %v2730 = vmul.f32 %v371, %v2581
    %v2731 = vmul.f32 %v375, %v2581
    %v2732 = vmul.f32 %v382, %v2585
    %v2733 = vmul.f32 %v386, %v2585
    %v2734 = vmul.f32 %v393, %v2589
    %v2735 = vmul.f32 %v397, %v2589
    %v2736 = vmul.f32 %v404, %v2593
    %v2737 = vmul.f32 %v408, %v2593
    %v2738 = vmul.f32 %v415, %v2597
    %v2739 = vmul.f32 %v419, %v2597
    %v2740 = vmul.f32 %v426, %v2601
    %v2741 = vmul.f32 %v430, %v2601
    %v2742 = vmul.f32 %v437, %v2605
    %v2743 = vmul.f32 %v441, %v2605
    %v2744 = vmul.f32 %v448, %v2609
    %v2745 = vmul.f32 %v452, %v2609
    %v2746 = vmul.f32 %v459, %v2613
    %v2747 = vmul.f32 %v463, %v2613
    %v2748 = vmul.f32 %v470, %v2617
    %v2749 = vmul.f32 %v474, %v2617
    %v2750 = vmul.f32 %v481, %v2621
    %v2751 = vmul.f32 %v485, %v2621
    %v2752 = vmul.f32 %v492, %v2625
    %v2753 = vmul.f32 %v496, %v2625
    %v2754 = vmul.f32 %v503, %v2629
    %v2755 = vmul.f32 %v507, %v2629
    %v2756 = vmul.f32 %v514, %v2633
    %v2757 = vmul.f32 %v518, %v2633
    %v2758 = vmul.f32 %v525, %v2637
    %v2759 = vmul.f32 %v529, %v2637
    %v2760 = vmul.f32 %v536, %v2641
    %v2761 = vmul.f32 %v540, %v2641
    %v2762 = vmul.f32 %v547, %v2645
    %v2763 = vmul.f32 %v551, %v2645
    %v2764 = vmul.f32 %v558, %v2649
    %v2765 = vmul.f32 %v562, %v2649
    %v2766 = vmul.f32 %v569, %v2653
    %v2767 = vmul.f32 %v573, %v2653
    %v2768 = vmul.f32 %v580, %v2657
    %v2769 = vmul.f32 %v584, %v2657
    %v2770 = vmul.f32 %v591, %v2661
    %v2771 = vmul.f32 %v595, %v2661
    %v2772 = vmul.f32 %v602, %v2665
    %v2773 = vmul.f32 %v606, %v2665
    %v2774 = vmul.f32 %v613, %v2669
    %v2775 = vmul.f32 %v617, %v2669
    %v2776 = vmul.f32 %v624, %v2673
    %v2777 = vmul.f32 %v628, %v2673
    %v2778 = vmul.f32 %v635, %v2677
    %v2779 = vmul.f32 %v639, %v2677
    %v2780 = vmul.f32 %v646, %v2681
    %v2781 = vmul.f32 %v650, %v2681
    %v2782 = vmul.f32 %v657, %v2685
    %v2783 = vmul.f32 %v661, %v2685
    %v2784 = vmul.f32 %v668, %v2689
    %v2785 = vmul.f32 %v672, %v2689
    %v2786 = vsel %vm219, %v2722, -inf
    %v2787 = vsel %vm219, %v2724, -inf
    %v2788 = vsel %vm219, %v2726, -inf
    %v2789 = vmax.f32 %v2786, %v2788
    %v2790 = vsel %vm219, %v2728, -inf
    %v2791 = vmax.f32 %v2787, %v2790
    %v2792 = vsel %vm219, %v2730, -inf
    %v2793 = vmax.f32 %v2789, %v2792
    %v2794 = vsel %vm219, %v2732, -inf
    %v2795 = vmax.f32 %v2791, %v2794
    %v2796 = vsel %vm219, %v2734, -inf
    %v2797 = vmax.f32 %v2793, %v2796
    %v2798 = vsel %vm219, %v2736, -inf
    %v2799 = vmax.f32 %v2795, %v2798
    %v2800 = vsel %vm219, %v2738, -inf
    %v2801 = vmax.f32 %v2797, %v2800
    %v2802 = vsel %vm219, %v2740, -inf
    %v2803 = vmax.f32 %v2799, %v2802
    %v2804 = vsel %vm219, %v2742, -inf
    %v2805 = vmax.f32 %v2801, %v2804
    %v2806 = vsel %vm219, %v2744, -inf
    %v2807 = vmax.f32 %v2803, %v2806
    %v2808 = vsel %vm219, %v2746, -inf
    %v2809 = vmax.f32 %v2805, %v2808
    %v2810 = vsel %vm219, %v2748, -inf
    %v2811 = vmax.f32 %v2807, %v2810
    %v2812 = vsel %vm219, %v2750, -inf
    %v2813 = vmax.f32 %v2809, %v2812
    %v2814 = vsel %vm219, %v2752, -inf
    %v2815 = vmax.f32 %v2811, %v2814
    %v2816 = vsel %vm219, %v2754, -inf
    %v2817 = vmax.f32 %v2813, %v2816
    %v2818 = vsel %vm219, %v2756, -inf
    %v2819 = vmax.f32 %v2815, %v2818
    %v2820 = vsel %vm219, %v2758, -inf
    %v2821 = vmax.f32 %v2817, %v2820
    %v2822 = vsel %vm219, %v2760, -inf
    %v2823 = vmax.f32 %v2819, %v2822
    %v2824 = vsel %vm219, %v2762, -inf
    %v2825 = vmax.f32 %v2821, %v2824
    %v2826 = vsel %vm219, %v2764, -inf
    %v2827 = vmax.f32 %v2823, %v2826
    %v2828 = vsel %vm219, %v2766, -inf
    %v2829 = vmax.f32 %v2825, %v2828
    %v2830 = vsel %vm219, %v2768, -inf
    %v2831 = vmax.f32 %v2827, %v2830
    %v2832 = vsel %vm219, %v2770, -inf
    %v2833 = vmax.f32 %v2829, %v2832
    %v2834 = vsel %vm219, %v2772, -inf
    %v2835 = vmax.f32 %v2831, %v2834
    %v2836 = vsel %vm219, %v2774, -inf
    %v2837 = vmax.f32 %v2833, %v2836
    %v2838 = vsel %vm219, %v2776, -inf
    %v2839 = vmax.f32 %v2835, %v2838
    %v2840 = vsel %vm219, %v2778, -inf
    %v2841 = vmax.f32 %v2837, %v2840
    %v2842 = vsel %vm219, %v2780, -inf
    %v2843 = vmax.f32 %v2839, %v2842
    %v2844 = vsel %vm219, %v2782, -inf
    %v2845 = vmax.f32 %v2841, %v2844
    %v2846 = vsel %vm219, %v2784, -inf
    %v2847 = vmax.f32 %v2843, %v2846
    %v2848 = vmax.f32 %v2845, %v2847
    %v2849 = vsel %vm219, %v2723, -inf
    %v2850 = vsel %vm219, %v2725, -inf
    %v2851 = vsel %vm219, %v2727, -inf
    %v2852 = vmax.f32 %v2849, %v2851
    %v2853 = vsel %vm219, %v2729, -inf
    %v2854 = vmax.f32 %v2850, %v2853
    %v2855 = vsel %vm219, %v2731, -inf
    %v2856 = vmax.f32 %v2852, %v2855
    %v2857 = vsel %vm219, %v2733, -inf
    %v2858 = vmax.f32 %v2854, %v2857
    %v2859 = vsel %vm219, %v2735, -inf
    %v2860 = vmax.f32 %v2856, %v2859
    %v2861 = vsel %vm219, %v2737, -inf
    %v2862 = vmax.f32 %v2858, %v2861
    %v2863 = vsel %vm219, %v2739, -inf
    %v2864 = vmax.f32 %v2860, %v2863
    %v2865 = vsel %vm219, %v2741, -inf
    %v2866 = vmax.f32 %v2862, %v2865
    %v2867 = vsel %vm219, %v2743, -inf
    %v2868 = vmax.f32 %v2864, %v2867
    %v2869 = vsel %vm219, %v2745, -inf
    %v2870 = vmax.f32 %v2866, %v2869
    %v2871 = vsel %vm219, %v2747, -inf
    %v2872 = vmax.f32 %v2868, %v2871
    %v2873 = vsel %vm219, %v2749, -inf
    %v2874 = vmax.f32 %v2870, %v2873
    %v2875 = vsel %vm219, %v2751, -inf
    %v2876 = vmax.f32 %v2872, %v2875
    %v2877 = vsel %vm219, %v2753, -inf
    %v2878 = vmax.f32 %v2874, %v2877
    %v2879 = vsel %vm219, %v2755, -inf
    %v2880 = vmax.f32 %v2876, %v2879
    %v2881 = vsel %vm219, %v2757, -inf
    %v2882 = vmax.f32 %v2878, %v2881
    %v2883 = vsel %vm219, %v2759, -inf
    %v2884 = vmax.f32 %v2880, %v2883
    %v2885 = vsel %vm219, %v2761, -inf
    %v2886 = vmax.f32 %v2882, %v2885
    %v2887 = vsel %vm219, %v2763, -inf
    %v2888 = vmax.f32 %v2884, %v2887
    %v2889 = vsel %vm219, %v2765, -inf
    %v2890 = vmax.f32 %v2886, %v2889
    %v2891 = vsel %vm219, %v2767, -inf
    %v2892 = vmax.f32 %v2888, %v2891
    %v2893 = vsel %vm219, %v2769, -inf
    %v2894 = vmax.f32 %v2890, %v2893
    %v2895 = vsel %vm219, %v2771, -inf
    %v2896 = vmax.f32 %v2892, %v2895
    %v2897 = vsel %vm219, %v2773, -inf
    %v2898 = vmax.f32 %v2894, %v2897
    %v2899 = vsel %vm219, %v2775, -inf
    %v2900 = vmax.f32 %v2896, %v2899
    %v2901 = vsel %vm219, %v2777, -inf
    %v2902 = vmax.f32 %v2898, %v2901
    %v2903 = vsel %vm219, %v2779, -inf
    %v2904 = vmax.f32 %v2900, %v2903
    %v2905 = vsel %vm219, %v2781, -inf
    %v2906 = vmax.f32 %v2902, %v2905
    %v2907 = vsel %vm219, %v2783, -inf
    %v2908 = vmax.f32 %v2904, %v2907
    %v2909 = vsel %vm219, %v2785, -inf
    %v2910 = vmax.f32 %v2906, %v2909
    %v2911 = vmax.f32 %v2908, %v2910
    %v2912 = vsel %vm219, %v2848, 0.0
    %v2913 = vsel %vm219, %v2911, 0.0
    %v2914 = vadd.f32 %v2912, %v2913
    %v2915 = vrot.slane %v2914, 4
    %v2916 = vadd.f32 %v2914, %v2915
    %v2917 = vrot.slane %v2916, 2
    %v2918 = vadd.f32 %v2916, %v2917
    %v2919 = vrot.slane %v2918, 1
    %v2920 = vadd.f32 %v2918, %v2919
    %v2921 = vmul.f32 %v2920, %v1232
    %v2922 = vmul.f32 %v2848, %v2848
    %v2923 = vmul.f32 %v2911, %v2911
    %v2924 = vsel %vm219, %v2922, 0.0
    %v2925 = vsel %vm219, %v2923, 0.0
    %v2926 = vadd.f32 %v2924, %v2925
    %v2927 = vrot.slane %v2926, 4
    %v2928 = vadd.f32 %v2926, %v2927
    %v2929 = vrot.slane %v2928, 2
    %v2930 = vadd.f32 %v2928, %v2929
    %v2931 = vrot.slane %v2930, 1
    %v2932 = vadd.f32 %v2930, %v2931
    %v2933 = vmul.f32 %v2932, %v1232
    %v2934 = vmul.f32 %v2921, %v2921
    %v2935 = vsub.f32 %v2933, %v2934
    %v2936 = vmax.f32 %v2935, 0.0
    %v2937 = vsub.f32 %v2848, %v2921
    %v2938 = vsub.f32 %v2911, %v2921
    %v2939 = vadd.f32 %v2936, 1e-05
    %v2940 = vrsqrt.pop %v2939
    %v2941 = vmul.f32 %v2937, %v2940
    %v2942 = vmul.f32 %v2938, %v2940
    %v2943 = vlaneseq
    %v2944 = vshrl.u32 %v2943, 7
    %v2945 = vsub.s32 7, %v2944
    %v2946 = vrot.slane %v34, %v2945
    %v2947 = vmul.f32 %v2941, %v2946
    %v2948 = vmul.f32 %v2942, %v2946
    %v2949 = vlaneseq
    %v2950 = vshrl.u32 %v2949, 7
    %v2951 = vsub.s32 0, %v2950
    %v2952 = vrot.slane %v35, %v2951
    %v2953 = vadd.f32 %v2947, %v2952
    %v2954 = vadd.f32 %v2948, %v2952
    %v2955 = vld [vmem:[%s2] sm:$0x3]
    %v2957 = vsel %vm58, %v2955, 0
    %2959 = vmatprep.subr.mxu0 0.0
    %2960 = vmatpush1.msra.mxu0 %v2953
    %2961 = vmatprep.subr.mxu0 0.0
    %2962 = vmatpush1.msra.mxu0 %v2954
    %2963 = vmatprep.subr.mxu0 0.0
    %2964 = vmatpush1.msra.mxu0 0.0
    %2965 = vmatprep.subr.mxu0 0.0
    %2966 = vmatpush1.msra.mxu0 0.0
    %2967 = vmatprep.subr.mxu0 0.0
    %2968 = vmatpush1.msra.mxu0 0.0
    %2969 = vmatprep.subr.mxu0 0.0
    %2970 = vmatpush1.msra.mxu0 0.0
    %2971 = vmatprep.subr.mxu0 0.0
    %2972 = vmatpush1.msra.mxu0 0.0
    %2973 = vmatprep.subr.mxu0 0.0
    %2974 = vmatpush1.msra.mxu0 0.0
    %2975 = vmatprep.subr.mxu0 0.0
    %2976 = vmatpush1.msra.mxu0 0.0
    %2977 = vmatprep.subr.mxu0 0.0
    %2978 = vmatpush1.msra.mxu0 0.0
    %2979 = vmatprep.subr.mxu0 0.0
    %2980 = vmatpush1.msra.mxu0 0.0
    %2981 = vmatprep.subr.mxu0 0.0
    %2982 = vmatpush1.msra.mxu0 0.0
    %2983 = vmatprep.subr.mxu0 0.0
    %2984 = vmatpush1.msra.mxu0 0.0
    %2985 = vmatprep.subr.mxu0 0.0
    %2986 = vmatpush1.msra.mxu0 0.0
    %2987 = vmatprep.subr.mxu0 0.0
    %2988 = vmatpush1.msra.mxu0 0.0
    %2989 = vmatprep.subr.mxu0 0.0
    %2990 = vmatpush1.msra.mxu0 0.0
    %2991 = vmatprep.subr.mxu0 0.0
    %2992 = vmatpush1.msra.mxu0 0.0
    %2993 = vmatprep.subr.mxu0 0.0
    %2994 = vmatpush1.msra.mxu0 0.0
    %2995 = vmatprep.subr.mxu0 0.0
    %2996 = vmatpush1.msra.mxu0 0.0
    %2997 = vmatprep.subr.mxu0 0.0
    %2998 = vmatpush1.msra.mxu0 0.0
    %2999 = vmatprep.subr.mxu0 0.0
    %3000 = vmatpush1.msra.mxu0 0.0
    %3001 = vmatprep.subr.mxu0 0.0
    %3002 = vmatpush1.msra.mxu0 0.0
    %3003 = vmatprep.subr.mxu0 0.0
    %3004 = vmatpush1.msra.mxu0 0.0
    %3005 = vmatprep.subr.mxu0 0.0
    %3006 = vmatpush1.msra.mxu0 0.0
    %3007 = vmatprep.subr.mxu0 0.0
    %3008 = vmatpush1.msra.mxu0 0.0
    %3009 = vmatprep.subr.mxu0 0.0
    %3010 = vmatpush1.msra.mxu0 0.0
    %3011 = vmatprep.subr.mxu0 0.0
    %3012 = vmatpush1.msra.mxu0 0.0
    %3013 = vmatprep.subr.mxu0 0.0
    %3014 = vmatpush1.msra.mxu0 0.0
    %3015 = vmatprep.subr.mxu0 0.0
    %3016 = vmatpush1.msra.mxu0 0.0
    %3017 = vmatprep.subr.mxu0 0.0
    %3018 = vmatpush1.msra.mxu0 0.0
    %3019 = vmatprep.subr.mxu0 0.0
    %3020 = vmatpush1.msra.mxu0 0.0
    %3021 = vmatprep.subr.mxu0 0.0
    %3022 = vmatpush1.msra.mxu0 0.0
    %3023 = vmatprep.mubr.f32.mxu0 0.0
    %3024 = vmatmul.mubr.f32.gmra.mrb[0].mxu0 %v2957
    %v3025 = vpop.f32.mrb[0].mxu0
    %v3026 = vadd.f32 0.0, %v3025
    %v3027 = vpop.f32.mrb[0].mxu0
    %3028 = vdwg.mxu0
    %v3029 = vld [vmem:[%s6] sm:$0xff]
    %v3030 = vld [vmem:[%s6 + $0x8] sm:$0xff]
    %v3031 = vld [vmem:[%s6 + $0x10] sm:$0xff]
    %v3032 = vld [vmem:[%s6 + $0x18] sm:$0xff]
    %v3033 = vld [vmem:[%s7] sm:$0x1]
    %v3035 = vlaneseq
    %v3036 = vshrl.u32 %v3035, 7
    %v3037 = vsub.s32 0, %v3036
    %v3038 = vrot.slane %v3033, %v3037
    %v3041 = vsel %vm219, %v3026, 0
    %3043 = vmatprep.subr.mxu0 0.0
    %3044 = vmatpush1.msra.mxu0 %v3029
    %3045 = vmatprep.subr.mxu0 0.0
    %3046 = vmatpush1.msra.mxu0 %v3030
    %3047 = vmatprep.subr.mxu0 0.0
    %3048 = vmatpush1.msra.mxu0 %v3031
    %3049 = vmatprep.subr.mxu0 0.0
    %3050 = vmatpush1.msra.mxu0 %v3032
    %3051 = vmatprep.subr.mxu0 0.0
    %3052 = vmatpush1.msra.mxu0 0.0
    %3053 = vmatprep.subr.mxu0 0.0
    %3054 = vmatpush1.msra.mxu0 0.0
    %3055 = vmatprep.subr.mxu0 0.0
    %3056 = vmatpush1.msra.mxu0 0.0
    %3057 = vmatprep.subr.mxu0 0.0
    %3058 = vmatpush1.msra.mxu0 0.0
    %3059 = vmatprep.subr.mxu0 0.0
    %3060 = vmatpush1.msra.mxu0 0.0
    %3061 = vmatprep.subr.mxu0 0.0
    %3062 = vmatpush1.msra.mxu0 0.0
    %3063 = vmatprep.subr.mxu0 0.0
    %3064 = vmatpush1.msra.mxu0 0.0
    %3065 = vmatprep.subr.mxu0 0.0
    %3066 = vmatpush1.msra.mxu0 0.0
    %3067 = vmatprep.subr.mxu0 0.0
    %3068 = vmatpush1.msra.mxu0 0.0
    %3069 = vmatprep.subr.mxu0 0.0
    %3070 = vmatpush1.msra.mxu0 0.0
    %3071 = vmatprep.subr.mxu0 0.0
    %3072 = vmatpush1.msra.mxu0 0.0
    %3073 = vmatprep.subr.mxu0 0.0
    %3074 = vmatpush1.msra.mxu0 0.0
    %3075 = vmatprep.subr.mxu0 0.0
    %3076 = vmatpush1.msra.mxu0 0.0
    %3077 = vmatprep.subr.mxu0 0.0
    %3078 = vmatpush1.msra.mxu0 0.0
    %3079 = vmatprep.subr.mxu0 0.0
    %3080 = vmatpush1.msra.mxu0 0.0
    %3081 = vmatprep.subr.mxu0 0.0
    %3082 = vmatpush1.msra.mxu0 0.0
    %3083 = vmatprep.subr.mxu0 0.0
    %3084 = vmatpush1.msra.mxu0 0.0
    %3085 = vmatprep.subr.mxu0 0.0
    %3086 = vmatpush1.msra.mxu0 0.0
    %3087 = vmatprep.subr.mxu0 0.0
    %3088 = vmatpush1.msra.mxu0 0.0
    %3089 = vmatprep.subr.mxu0 0.0
    %3090 = vmatpush1.msra.mxu0 0.0
    %3091 = vmatprep.subr.mxu0 0.0
    %3092 = vmatpush1.msra.mxu0 0.0
    %3093 = vmatprep.subr.mxu0 0.0
    %3094 = vmatpush1.msra.mxu0 0.0
    %3095 = vmatprep.subr.mxu0 0.0
    %3096 = vmatpush1.msra.mxu0 0.0
    %3097 = vmatprep.subr.mxu0 0.0
    %3098 = vmatpush1.msra.mxu0 0.0
    %3099 = vmatprep.subr.mxu0 0.0
    %3100 = vmatpush1.msra.mxu0 0.0
    %3101 = vmatprep.subr.mxu0 0.0
    %3102 = vmatpush1.msra.mxu0 0.0
    %3103 = vmatprep.subr.mxu0 0.0
    %3104 = vmatpush1.msra.mxu0 0.0
    %3105 = vmatprep.subr.mxu0 0.0
    %3106 = vmatpush1.msra.mxu0 0.0
    %3107 = vmatprep.mubr.f32.mxu0 0.0
    %3108 = vmatmul.mubr.f32.gmra.mrb[0].mxu0 %v3041
    %v3109 = vpop.f32.mrb[0].mxu0
    %v3110 = vadd.f32 %v3038, %v3109
    %v3111 = vpop.f32.mrb[0].mxu0
    %3112 = vdwg.mxu0
    %vm3113 = vcmask 9216
    %v3114 = vsel %vm3113, %v3110, -inf
    %3115 = vmax.xlane.f32.xlu0 %v3114
    %v3116 = vpop.xlane.xlu0 %3115
    %v3117 = vsub.f32 %v3110, %v3116
    %v3118 = vmul.f32 %v3117, 1.442695
    %v3119 = vpow.pop %v3118
    %v3120 = vsel %vm3113, %v3119, 0.0
    %3121 = vadd.xlane.f32.xlu0 %v3120
    %v3122 = vpop.xlane.xlu0 %3121
    %v3123 = vrcp.pop %v3122
    %v3124 = vmul.f32 %v3119, %v3123
    %3125 = vst.msk [vmem:[#allocation2] sm:$0x3] %vm3113, %v3124
    // Predicated region
    $region34: #{graph_network_forward.1} parent=1 // pred_check
      _
    $region35: #{graph_network_forward.1} parent=1 // pred_check_branch
      %3127 = sbr.rel (0) target = $region37
    $region36: #{graph_network_forward.1} parent=1 // pred_region
      %s3129 = ssub.s32 32, 32
      %3130 = vsyncadd [#allocation3], %s3129
      %s3132 = sshll.u32 [#allocation2], 4
      %s3133 = int_to_ptr.vmem [resolvable:$true] %s3132
      %3135 = dma.vmem_to_hbm [thread:$0]  %s3133, 32, %s8, [#allocation3]
    $region37: #{graph_network_forward.1} parent=1 // pred_fallthru
      _
    // Predicated region
    $region38: #{graph_network_forward.1} parent=1 // pred_check
      _
    $region39: #{graph_network_forward.1} parent=1 // pred_check_branch
      %3137 = sbr.rel (0) target = $region41
    $region40: #{graph_network_forward.1} parent=1 // pred_region
      %3138 = dma.done [#allocation3], 32
    $region41: #{graph_network_forward.1} parent=1 // pred_fallthru
      _
    %3139 = vsyncpa [#allocation3], 1

</llo_original>
